<compile_context>
chip_gen: v7x
topology: tpu7x:2x2x1
jax: 0.10.0
libtpu: 0.0.40
codegen_flags: <defaults>
</compile_context>

<pallas_src>
import math
import functools

import jax
import jax.numpy as jnp
from jax.experimental import pallas as pl
from jax.experimental.pallas import tpu as pltpu

# ---- "BuDingConfig" (synthetic, small) ----
HIDDEN = 256
NUM_HEADS = 2
NUM_KV_HEADS = 1
HEAD_DIM = HIDDEN // NUM_HEADS                     # 128 (lane-friendly)
N_REP = NUM_HEADS // NUM_KV_HEADS
QKV_OUT = (NUM_HEADS + 2 * NUM_KV_HEADS) * HEAD_DIM
ROPE_THETA = 10000.0
MAX_POS = 64
ATTN_DROPOUT = 0.0                                 # eval mode -> dropout is a no-op


# ---------------- fused Pallas kernel (one batch element per grid step) ----------------

def _fused_attn_kernel(x_ref, wqkv_ref, bqkv_ref, wo_ref, mask_ref, cos_ref, sin_ref,
                       o_ref, *, S, H, Hkv, D):
    """Fused QKV proj + RoPE + GQA attention + per-head O-proj accumulation.

    x_ref:    (S, HIDDEN)  f32       activations for this batch element
    wqkv_ref: (HIDDEN, (H+2*Hkv)*D)  bf16, [wq*scale | wk | wv]
    bqkv_ref: (1, (H+2*Hkv)*D)       f32,  [bq*scale | bk | bv]
    wo_ref:   (H*D, HIDDEN)          bf16
    mask_ref: (1, S, S)              f32 additive attention mask (head-broadcast)
    cos_ref:  (S, D) f32             cos table gathered by position_ids
    sin_ref:  (S, D) f32             sin table gathered by position_ids, sign-folded
    o_ref:    (S, HIDDEN)
    """
    n_rep = H // Hkv
    half = D // 2

    # --- fused QKV projection: one fat bf16 MXU pass, f32 accumulate ---
    x = x_ref[...].astype(jnp.bfloat16)
    qkv = jnp.dot(x, wqkv_ref[...], preferred_element_type=jnp.float32) + bqkv_ref[...]

    cos = cos_ref[...]                  # (S, D) f32
    sin_s = sin_ref[...]                # (S, D) f32 (sign already folded in)
    mask = mask_ref[0]                  # (S, S) f32

    def rope(t):
        # rotate_half(t) == roll(t, D/2 lanes) * [-1..-1, +1..+1]; sign lives in sin_s.
        # Lane rotation runs on the XLU; mul-adds stay in f32 on the VPU.
        return t * cos + pltpu.roll(t, shift=half, axis=1) * sin_s

    # K is RoPE'd once per KV head (not once per query head); bf16 copies for the MXU.
    k_h = [rope(qkv[:, (H + g) * D:(H + g + 1) * D]).astype(jnp.bfloat16)
           for g in range(Hkv)]
    v_h = [qkv[:, (H + Hkv + g) * D:(H + Hkv + g + 1) * D].astype(jnp.bfloat16)
           for g in range(Hkv)]

    acc = jnp.zeros((S, o_ref.shape[1]), jnp.float32)
    for h in range(H):                  # tiny static loop, unrolled at trace time
        g = h // n_rep
        qh = rope(qkv[:, h * D:(h + 1) * D]).astype(jnp.bfloat16)

        # scores: the 1/sqrt(D) scale was folded into wq/bq at prep time.
        s = jax.lax.dot_general(qh, k_h[g], (((1,), (1,)), ((), ())),
                                preferred_element_type=jnp.float32) + mask  # (S, S)

        # softmax in f32 (matches torch softmax(dtype=float32)); recip on the EUP.
        m = jnp.max(s, axis=-1, keepdims=True)
        p = jnp.exp(s - m)
        p = p * pl.reciprocal(jnp.sum(p, axis=-1, keepdims=True), approx=True)
        # TODO(synk): attention dropout is training-only; eval semantics -> no-op.

        pv = jnp.dot(p.astype(jnp.bfloat16), v_h[g],
                     preferred_element_type=jnp.float32)                    # (S, D)

        # Fused per-head O-projection: no (S, H*D) attn tensor is ever assembled.
        acc = acc + jnp.dot(pv.astype(jnp.bfloat16), wo_ref[h * D:(h + 1) * D, :],
                            preferred_element_type=jnp.float32)

    o_ref[...] = acc.astype(o_ref.dtype)


# ---------------- one-time parameter prep (NOT in the per-call jit) ----------------

def rotary_tables(dim, max_pos, base):
    inv_freq = 1.0 / (base ** (jnp.arange(0, dim, 2, dtype=jnp.float32) / dim))
    t = jnp.arange(max_pos, dtype=jnp.float32)
    freqs = jnp.outer(t, inv_freq)
    emb = jnp.concatenate([freqs, freqs], axis=-1)
    return jnp.cos(emb), jnp.sin(emb)


def prepare_params(params):
    """Concatenate QKV weights, fold the attention scale into q, cast MXU weights to
    bf16, and build the sign-folded sin table — all once, outside the forward jit."""
    scale = 1.0 / math.sqrt(HEAD_DIM)
    wqkv = jnp.concatenate(
        [params["wq"] * scale, params["wk"], params["wv"]], axis=1).astype(jnp.bfloat16)
    bqkv = jnp.concatenate(
        [params["bq"] * scale, params["bk"], params["bv"]], axis=0
    ).reshape(1, QKV_OUT).astype(jnp.float32)
    wo = params["wo"].astype(jnp.bfloat16)

    cos_c, sin_c = rotary_tables(HEAD_DIM, MAX_POS, ROPE_THETA)
    sign = jnp.concatenate([-jnp.ones(HEAD_DIM // 2, jnp.float32),
                            jnp.ones(HEAD_DIM // 2, jnp.float32)])
    sin_signed = sin_c * sign[None, :]          # fold rotate_half's sign into sin

    return {"wqkv": wqkv, "bqkv": bqkv, "wo": wo,
            "cos": cos_c, "sin_signed": sin_signed}


# ---------------- forward (jit wrapper around one pallas_call) ----------------

@jax.jit
def buding_attention_forward(prep, hidden_states, attention_mask, position_ids):
    B, S, _ = hidden_states.shape
    x2d = hidden_states.reshape(B * S, HIDDEN)

    # Rotary tables gathered with the full per-batch position_ids (sign pre-folded).
    cos = prep["cos"][position_ids].reshape(B * S, HEAD_DIM)
    sin = prep["sin_signed"][position_ids].reshape(B * S, HEAD_DIM)

    mask3 = attention_mask.reshape(B, S, S)     # head-broadcast additive mask

    kernel = functools.partial(_fused_attn_kernel, S=S, H=NUM_HEADS,
                               Hkv=NUM_KV_HEADS, D=HEAD_DIM)

    flops = (2 * B * S * HIDDEN * QKV_OUT                       # QKV proj
             + 2 * 2 * B * NUM_HEADS * S * S * HEAD_DIM          # scores + PV
             + 2 * B * S * NUM_HEADS * HEAD_DIM * HIDDEN)        # O proj
    bytes_accessed = (B * S * HIDDEN * 4 + HIDDEN * QKV_OUT * 2 + QKV_OUT * 4
                      + NUM_HEADS * HEAD_DIM * HIDDEN * 2 + B * S * S * 4
                      + 2 * B * S * HEAD_DIM * 4 + B * S * HIDDEN * 4)

    out = pl.pallas_call(
        kernel,
        out_shape=jax.ShapeDtypeStruct((B * S, HIDDEN), hidden_states.dtype),
        grid_spec=pltpu.PrefetchScalarGridSpec(
            num_scalar_prefetch=0,
            grid=(B,),                                          # one batch per step
            in_specs=[
                pl.BlockSpec((S, HIDDEN), lambda b: (b, 0)),                    # x
                pl.BlockSpec((HIDDEN, QKV_OUT), lambda b: (0, 0)),              # wqkv
                pl.BlockSpec((1, QKV_OUT), lambda b: (0, 0)),                   # bqkv
                pl.BlockSpec((NUM_HEADS * HEAD_DIM, HIDDEN), lambda b: (0, 0)), # wo
                pl.BlockSpec((1, S, S), lambda b: (b, 0, 0)),                   # mask
                pl.BlockSpec((S, HEAD_DIM), lambda b: (b, 0)),                  # cos
                pl.BlockSpec((S, HEAD_DIM), lambda b: (b, 0)),                  # sin
            ],
            out_specs=pl.BlockSpec((S, HIDDEN), lambda b: (b, 0)),
        ),
        compiler_params=pltpu.CompilerParams(
            dimension_semantics=("parallel",)),                 # shard batches on v7x
        cost_estimate=pl.CostEstimate(flops=flops,
                                      transcendentals=B * NUM_HEADS * S * S,
                                      bytes_accessed=bytes_accessed),
    )(x2d, prep["wqkv"], prep["bqkv"], prep["wo"], mask3, cos, sin)

    return out.reshape(B, S, HIDDEN)


# ---------------- pure-JAX reference (PyTorch semantics, f32) ----------------

def reference_forward(params, x, attention_mask, position_ids):
    B, S, _ = x.shape
    hp = jax.lax.Precision.HIGHEST
    q = jnp.einsum("bsh,hd->bsd", x, params["wq"], precision=hp) + params["bq"]
    k = jnp.einsum("bsh,hd->bsd", x, params["wk"], precision=hp) + params["bk"]
    v = jnp.einsum("bsh,hd->bsd", x, params["wv"], precision=hp) + params["bv"]
    q = q.reshape(B, S, NUM_HEADS, HEAD_DIM).transpose(0, 2, 1, 3)
    k = k.reshape(B, S, NUM_KV_HEADS, HEAD_DIM).transpose(0, 2, 1, 3)
    v = v.reshape(B, S, NUM_KV_HEADS, HEAD_DIM).transpose(0, 2, 1, 3)

    cos_c, sin_c = rotary_tables(HEAD_DIM, MAX_POS, ROPE_THETA)
    cos = cos_c[position_ids][:, None, :, :]
    sin = sin_c[position_ids][:, None, :, :]

    def rotate_half(t):
        h = t.shape[-1] // 2
        return jnp.concatenate([-t[..., h:], t[..., :h]], axis=-1)

    q = q * cos + rotate_half(q) * sin
    k = k * cos + rotate_half(k) * sin
    k = jnp.repeat(k, N_REP, axis=1)
    v = jnp.repeat(v, N_REP, axis=1)

    s = jnp.einsum("bhqd,bhkd->bhqk", q, k, precision=hp) / math.sqrt(HEAD_DIM)
    s = s + attention_mask
    p = jax.nn.softmax(s, axis=-1)
    o = jnp.einsum("bhqk,bhkd->bhqd", p, v, precision=hp)
    o = o.transpose(0, 2, 1, 3).reshape(B, S, HIDDEN)
    return jnp.einsum("bsh,ho->bso", o, params["wo"], precision=hp)


# ---------------- main ----------------

if __name__ == "__main__":
    key = jax.random.PRNGKey(0)
    ks = jax.random.split(key, 8)
    B, S = 2, 8
    std = 0.02

    params = {
        "wq": std * jax.random.normal(ks[0], (HIDDEN, NUM_HEADS * HEAD_DIM), jnp.float32),
        "bq": std * jax.random.normal(ks[1], (NUM_HEADS * HEAD_DIM,), jnp.float32),
        "wk": std * jax.random.normal(ks[2], (HIDDEN, NUM_KV_HEADS * HEAD_DIM), jnp.float32),
        "bk": std * jax.random.normal(ks[3], (NUM_KV_HEADS * HEAD_DIM,), jnp.float32),
        "wv": std * jax.random.normal(ks[4], (HIDDEN, NUM_KV_HEADS * HEAD_DIM), jnp.float32),
        "bv": std * jax.random.normal(ks[5], (NUM_KV_HEADS * HEAD_DIM,), jnp.float32),
        "wo": std * jax.random.normal(ks[6], (NUM_HEADS * HEAD_DIM, HIDDEN), jnp.float32),
    }

    prep = jax.block_until_ready(prepare_params(params))        # one-time prep

    hidden_states = jax.random.normal(ks[7], (B, S, HIDDEN), jnp.float32)
    position_ids = jnp.broadcast_to(jnp.arange(S, dtype=jnp.int32), (B, S))

    # causal additive attention mask, shape (B, 1, S, S)
    row = jnp.arange(S)[:, None]
    col = jnp.arange(S)[None, :]
    causal = jnp.where(col <= row, 0.0, -1e9).astype(jnp.float32)
    attention_mask = jnp.broadcast_to(causal, (B, 1, S, S))

    out = buding_attention_forward(prep, hidden_states, attention_mask, position_ids)
    out = jax.block_until_ready(out)

    ref = reference_forward(params, hidden_states, attention_mask, position_ids)
    ref = jax.block_until_ready(ref)

    assert out.shape == (B, S, HIDDEN)
    # Tolerance accounts for bf16 MXU operands (f32 accumulation & f32 softmax/RoPE).
    assert jnp.allclose(out, ref, rtol=1e-2, atol=2e-3), (
        f"mismatch: max abs err {jnp.max(jnp.abs(out - ref))}"
    )
    print("KERNEL_OK")
</pallas_src>

<mosaic_0001>
module attributes {stable_mosaic.version = 11 : i64} {
  func.func @_fused_attn_kernel(%arg0: i32, %arg1: memref<8x256xf32, #tpu.memory_space<vmem>>, %arg2: memref<256x512xbf16, #tpu.memory_space<vmem>>, %arg3: memref<1x512xf32, #tpu.memory_space<vmem>>, %arg4: memref<256x256xbf16, #tpu.memory_space<vmem>>, %arg5: memref<1x8x8xf32, #tpu.memory_space<vmem>>, %arg6: memref<8x128xf32, #tpu.memory_space<vmem>>, %arg7: memref<8x128xf32, #tpu.memory_space<vmem>>, %arg8: memref<8x256xf32, #tpu.memory_space<vmem>>) attributes {dimension_semantics = [#tpu.dimension_semantics<parallel>], iteration_bounds = array<i64: 2>, scalar_prefetch = 0 : i64, scratch_operands = 0 : i64, tpu.core_type = #tpu.core_type<tc>, window_params = [{transform_indices = @transform_0, window_bounds = array<i64: 8, 256>}, {pipeline_mode = #tpu.pipeline_mode<synchronous>, transform_indices = @transform_1, window_bounds = array<i64: 256, 512>}, {pipeline_mode = #tpu.pipeline_mode<synchronous>, transform_indices = @transform_2, window_bounds = array<i64: 1, 512>}, {pipeline_mode = #tpu.pipeline_mode<synchronous>, transform_indices = @transform_3, window_bounds = array<i64: 256, 256>}, {transform_indices = @transform_4, window_bounds = array<i64: 1, 8, 8>}, {transform_indices = @transform_5, window_bounds = array<i64: 8, 128>}, {transform_indices = @transform_6, window_bounds = array<i64: 8, 128>}, {transform_indices = @transform_7, window_bounds = array<i64: 8, 256>}]} {
    %c0 = arith.constant 0 : index
    %c0_0 = arith.constant 0 : index
    %0 = vector.load %arg1[%c0, %c0_0] : memref<8x256xf32, #tpu.memory_space<vmem>>, vector<8x256xf32>
    %1 = arith.truncf %0 : vector<8x256xf32> to vector<8x256xbf16>
    %c0_1 = arith.constant 0 : index
    %c0_2 = arith.constant 0 : index
    %2 = vector.load %arg2[%c0_1, %c0_2] : memref<256x512xbf16, #tpu.memory_space<vmem>>, vector<256x512xbf16>
    %cst = arith.constant dense<0.000000e+00> : vector<8x512xf32>
    %3 = tpu.matmul %1, %2, %cst {dimension_numbers = #tpu.dot_dimension_numbers<[1], [0], [0], [1], [0, 0, 1, 1], [], []>} : vector<8x256xbf16>, vector<256x512xbf16>, vector<8x512xf32> -> vector<8x512xf32>
    %c0_3 = arith.constant 0 : index
    %c0_4 = arith.constant 0 : index
    %4 = vector.load %arg3[%c0_3, %c0_4] : memref<1x512xf32, #tpu.memory_space<vmem>>, vector<1x512xf32>
    %5 = vector.broadcast %4 : vector<1x512xf32> to vector<8x512xf32>
    %6 = arith.addf %3, %5 : vector<8x512xf32>
    %c0_5 = arith.constant 0 : index
    %c0_6 = arith.constant 0 : index
    %7 = vector.load %arg6[%c0_5, %c0_6] : memref<8x128xf32, #tpu.memory_space<vmem>>, vector<8x128xf32>
    %c0_7 = arith.constant 0 : index
    %c0_8 = arith.constant 0 : index
    %8 = vector.load %arg7[%c0_7, %c0_8] : memref<8x128xf32, #tpu.memory_space<vmem>>, vector<8x128xf32>
    %c0_9 = arith.constant 0 : index
    %c0_10 = arith.constant 0 : index
    %c0_11 = arith.constant 0 : index
    %9 = vector.load %arg5[%c0_9, %c0_10, %c0_11] : memref<1x8x8xf32, #tpu.memory_space<vmem>>, vector<1x8x8xf32>
    %10 = vector.shape_cast %9 : vector<1x8x8xf32> to vector<8x8xf32>
    %11 = vector.extract_strided_slice %6 {offsets = [0, 256], sizes = [8, 128], strides = [1, 1]} : vector<8x512xf32> to vector<8x128xf32>
    %12 = arith.mulf %11, %7 : vector<8x128xf32>
    %c64_i32 = arith.constant 64 : i32
    %13 = tpu.dynamic_rotate %11 by %c64_i32 dim 1 : vector<8x128xf32>, i32 -> vector<8x128xf32>
    %14 = arith.mulf %13, %8 : vector<8x128xf32>
    %15 = arith.addf %12, %14 : vector<8x128xf32>
    %16 = arith.truncf %15 : vector<8x128xf32> to vector<8x128xbf16>
    %17 = vector.extract_strided_slice %6 {offsets = [0, 384], sizes = [8, 128], strides = [1, 1]} : vector<8x512xf32> to vector<8x128xf32>
    %18 = arith.truncf %17 : vector<8x128xf32> to vector<8x128xbf16>
    %cst_12 = arith.constant 0.000000e+00 : f32
    %19 = vector.broadcast %cst_12 : f32 to vector<8x256xf32>
    %20 = vector.extract_strided_slice %6 {offsets = [0, 0], sizes = [8, 128], strides = [1, 1]} : vector<8x512xf32> to vector<8x128xf32>
    %21 = arith.mulf %20, %7 : vector<8x128xf32>
    %c64_i32_13 = arith.constant 64 : i32
    %22 = tpu.dynamic_rotate %20 by %c64_i32_13 dim 1 : vector<8x128xf32>, i32 -> vector<8x128xf32>
    %23 = arith.mulf %22, %8 : vector<8x128xf32>
    %24 = arith.addf %21, %23 : vector<8x128xf32>
    %25 = arith.truncf %24 : vector<8x128xf32> to vector<8x128xbf16>
    %cst_14 = arith.constant dense<0.000000e+00> : vector<8x8xf32>
    %26 = tpu.matmul %25, %16, %cst_14 {dimension_numbers = #tpu.dot_dimension_numbers<[1], [1], [0], [0], [0, 0, 1, 0], [], []>} : vector<8x128xbf16>, vector<8x128xbf16>, vector<8x8xf32> -> vector<8x8xf32>
    %27 = arith.addf %26, %10 : vector<8x8xf32>
    %cst_15 = arith.constant dense<0xFF800000> : vector<8xf32>
    %28 = vector.multi_reduction <maximumf>, %27, %cst_15 [1] : vector<8x8xf32> to vector<8xf32>
    %29 = vector.shape_cast %28 : vector<8xf32> to vector<8x1xf32>
    %30 = vector.broadcast %29 : vector<8x1xf32> to vector<8x8xf32>
    %31 = arith.subf %27, %30 : vector<8x8xf32>
    %32 = math.exp %31 : vector<8x8xf32>
    %cst_16 = arith.constant dense<0.000000e+00> : vector<8xf32>
    %33 = vector.multi_reduction <add>, %32, %cst_16 [1] : vector<8x8xf32> to vector<8xf32>
    %34 = vector.shape_cast %33 : vector<8xf32> to vector<8x1xf32>
    %35 = tpu.reciprocal %34 {approx = true} : vector<8x1xf32> -> vector<8x1xf32>
    %36 = vector.broadcast %35 : vector<8x1xf32> to vector<8x8xf32>
    %37 = arith.mulf %32, %36 : vector<8x8xf32>
    %38 = arith.truncf %37 : vector<8x8xf32> to vector<8x8xbf16>
    %cst_17 = arith.constant dense<0.000000e+00> : vector<8x128xf32>
    %39 = tpu.matmul %38, %18, %cst_17 {dimension_numbers = #tpu.dot_dimension_numbers<[1], [0], [0], [1], [0, 0, 1, 1], [], []>} : vector<8x8xbf16>, vector<8x128xbf16>, vector<8x128xf32> -> vector<8x128xf32>
    %40 = arith.truncf %39 : vector<8x128xf32> to vector<8x128xbf16>
    %c0_18 = arith.constant 0 : index
    %c0_19 = arith.constant 0 : index
    %41 = vector.load %arg4[%c0_18, %c0_19] : memref<256x256xbf16, #tpu.memory_space<vmem>>, vector<128x256xbf16>
    %cst_20 = arith.constant dense<0.000000e+00> : vector<8x256xf32>
    %42 = tpu.matmul %40, %41, %cst_20 {dimension_numbers = #tpu.dot_dimension_numbers<[1], [0], [0], [1], [0, 0, 1, 1], [], []>} : vector<8x128xbf16>, vector<128x256xbf16>, vector<8x256xf32> -> vector<8x256xf32>
    %43 = arith.addf %19, %42 : vector<8x256xf32>
    %44 = vector.extract_strided_slice %6 {offsets = [0, 128], sizes = [8, 128], strides = [1, 1]} : vector<8x512xf32> to vector<8x128xf32>
    %45 = arith.mulf %44, %7 : vector<8x128xf32>
    %c64_i32_21 = arith.constant 64 : i32
    %46 = tpu.dynamic_rotate %44 by %c64_i32_21 dim 1 : vector<8x128xf32>, i32 -> vector<8x128xf32>
    %47 = arith.mulf %46, %8 : vector<8x128xf32>
    %48 = arith.addf %45, %47 : vector<8x128xf32>
    %49 = arith.truncf %48 : vector<8x128xf32> to vector<8x128xbf16>
    %cst_22 = arith.constant dense<0.000000e+00> : vector<8x8xf32>
    %50 = tpu.matmul %49, %16, %cst_22 {dimension_numbers = #tpu.dot_dimension_numbers<[1], [1], [0], [0], [0, 0, 1, 0], [], []>} : vector<8x128xbf16>, vector<8x128xbf16>, vector<8x8xf32> -> vector<8x8xf32>
    %51 = arith.addf %50, %10 : vector<8x8xf32>
    %cst_23 = arith.constant dense<0xFF800000> : vector<8xf32>
    %52 = vector.multi_reduction <maximumf>, %51, %cst_23 [1] : vector<8x8xf32> to vector<8xf32>
    %53 = vector.shape_cast %52 : vector<8xf32> to vector<8x1xf32>
    %54 = vector.broadcast %53 : vector<8x1xf32> to vector<8x8xf32>
    %55 = arith.subf %51, %54 : vector<8x8xf32>
    %56 = math.exp %55 : vector<8x8xf32>
    %cst_24 = arith.constant dense<0.000000e+00> : vector<8xf32>
    %57 = vector.multi_reduction <add>, %56, %cst_24 [1] : vector<8x8xf32> to vector<8xf32>
    %58 = vector.shape_cast %57 : vector<8xf32> to vector<8x1xf32>
    %59 = tpu.reciprocal %58 {approx = true} : vector<8x1xf32> -> vector<8x1xf32>
    %60 = vector.broadcast %59 : vector<8x1xf32> to vector<8x8xf32>
    %61 = arith.mulf %56, %60 : vector<8x8xf32>
    %62 = arith.truncf %61 : vector<8x8xf32> to vector<8x8xbf16>
    %cst_25 = arith.constant dense<0.000000e+00> : vector<8x128xf32>
    %63 = tpu.matmul %62, %18, %cst_25 {dimension_numbers = #tpu.dot_dimension_numbers<[1], [0], [0], [1], [0, 0, 1, 1], [], []>} : vector<8x8xbf16>, vector<8x128xbf16>, vector<8x128xf32> -> vector<8x128xf32>
    %64 = arith.truncf %63 : vector<8x128xf32> to vector<8x128xbf16>
    %c128 = arith.constant 128 : index
    %c0_26 = arith.constant 0 : index
    %65 = vector.load %arg4[%c128, %c0_26] : memref<256x256xbf16, #tpu.memory_space<vmem>>, vector<128x256xbf16>
    %cst_27 = arith.constant dense<0.000000e+00> : vector<8x256xf32>
    %66 = tpu.matmul %64, %65, %cst_27 {dimension_numbers = #tpu.dot_dimension_numbers<[1], [0], [0], [1], [0, 0, 1, 1], [], []>} : vector<8x128xbf16>, vector<128x256xbf16>, vector<8x256xf32> -> vector<8x256xf32>
    %67 = arith.addf %43, %66 : vector<8x256xf32>
    %c0_28 = arith.constant 0 : index
    %c0_29 = arith.constant 0 : index
    %68 = vector.load %arg8[%c0_28, %c0_29] : memref<8x256xf32, #tpu.memory_space<vmem>>, vector<8x256xf32>
    tpu.vector_store %arg8[%c0_28, %c0_29], %67 {strides = array<i32>} : memref<8x256xf32, #tpu.memory_space<vmem>>, vector<8x256xf32>,
    return
  }
  func.func @transform_0(%arg0: i32) -> (i32, i32) {
    %c0_i32 = arith.constant 0 : i32
    %c0_i32_0 = arith.constant 0 : i32
    return %arg0, %c0_i32 : i32, i32
  }
  func.func @transform_1(%arg0: i32) -> (i32, i32) {
    %c0_i32 = arith.constant 0 : i32
    %c0_i32_0 = arith.constant 0 : i32
    %c0_i32_1 = arith.constant 0 : i32
    return %c0_i32, %c0_i32_0 : i32, i32
  }
  func.func @transform_2(%arg0: i32) -> (i32, i32) {
    %c0_i32 = arith.constant 0 : i32
    %c0_i32_0 = arith.constant 0 : i32
    %c0_i32_1 = arith.constant 0 : i32
    return %c0_i32, %c0_i32_0 : i32, i32
  }
  func.func @transform_3(%arg0: i32) -> (i32, i32) {
    %c0_i32 = arith.constant 0 : i32
    %c0_i32_0 = arith.constant 0 : i32
    %c0_i32_1 = arith.constant 0 : i32
    return %c0_i32, %c0_i32_0 : i32, i32
  }
  func.func @transform_4(%arg0: i32) -> (i32, i32, i32) {
    %c0_i32 = arith.constant 0 : i32
    %c0_i32_0 = arith.constant 0 : i32
    %c0_i32_1 = arith.constant 0 : i32
    return %arg0, %c0_i32, %c0_i32_0 : i32, i32, i32
  }
  func.func @transform_5(%arg0: i32) -> (i32, i32) {
    %c0_i32 = arith.constant 0 : i32
    %c0_i32_0 = arith.constant 0 : i32
    return %arg0, %c0_i32 : i32, i32
  }
  func.func @transform_6(%arg0: i32) -> (i32, i32) {
    %c0_i32 = arith.constant 0 : i32
    %c0_i32_0 = arith.constant 0 : i32
    return %arg0, %c0_i32 : i32, i32
  }
  func.func @transform_7(%arg0: i32) -> (i32, i32) {
    %c0_i32 = arith.constant 0 : i32
    %c0_i32_0 = arith.constant 0 : i32
    return %arg0, %c0_i32 : i32, i32
  }
}

</mosaic_0001>

<llo_original>
// kernel: buding_attention_forward.1
$region0: #{buding_attention_forward.1}
  #allocation0 [shape = 'u32[]', space=smem, size = 0x4, offset = 0x4, fixed_abs, tag = 'smem constant byte address 0x4 - core index']
  #allocation1 [shape = 'u32[144,128]{1,0:T(1,128)}', space=vmem, size = 0x12000, scoped, tag = 'internal scratch']
  %s0 = inlined_call_operand.vmem [shape: f32[16,256], index: 0, kind: input, shape index: {}]
  %s1 = inlined_call_operand.hbm [shape: bf16[256,512], index: 1, kind: input, shape index: {}]
  %s2 = inlined_call_operand.vmem [shape: f32[1,512], index: 2, kind: input, shape index: {}]
  %s3 = inlined_call_operand.vmem [shape: bf16[256,256], index: 3, kind: input, shape index: {}]
  %s4 = inlined_call_operand.vmem [shape: f32[2,8,8], index: 4, kind: input, shape index: {}]
  %s5 = inlined_call_operand.vmem [shape: f32[16,128], index: 5, kind: input, shape index: {}]
  %s6 = inlined_call_operand.vmem [shape: f32[16,128], index: 6, kind: input, shape index: {}]
  %s7 = inlined_call_operand.hbm [shape: f32[16,256], index: 7, kind: output, shape index: {}]
  %s8 = sld [smem:[#allocation0]]
  $region65: #{buding_attention_forward.1} parent=0
    _
  %s10 = ssub.s32 1, %s8
  %s11 = scalar_select 0, %s10, %s8
  $region1: #{buding_attention_forward.1} parent=0
    #allocation2 [shape = 'u8[262144]{0}', space=vmem, size = 0x40000, scoped, tag = 'input window, operand 1, single buffered']
    #allocation3 [shape = 's32[2]{0}', space=sflag, size = 0x8, scoped, tag = 'scoped memory for buding_attention_forward.1']
    #allocation4 [shape = 's32[2]{0}', space=sflag, size = 0x8, scoped, tag = 'scoped memory for buding_attention_forward.1']
    #allocation5 [shape = 'u8[16384]{0}', space=vmem, size = 0x4000, scoped, tag = 'output window, operand 0']
    %12 = vsyncpa [#allocation3], 0
    %13 = vsyncpa [#allocation4], 0
    %s14 = scalar_lea.sflag [#allocation4], 1
    %15 = vsyncpa %s14, 0
    loop: start=0, step=1, limit=4
    $region2: #{buding_attention_forward.1} parent=1 // loop_pre_header
      _
    $region3: #{buding_attention_forward.1} parent=1 // loop_header
      %s17 = sphi 0, %s21
      %p18 = scmp.ge.s32.totalorder %s17, 4
      %s27 = sphi 0, %s29
      %s30 = sphi 0, %s27
      %s31 = sphi 0, %s30
      %s47 = sphi 0, %s31
      %s51 = sphi 0, %s51
      %s53 = sphi 0, %s51
      %s54 = sphi 0, %s53
      %s68 = sphi 0, %s54
      %s72 = sphi 0, %s72
      %s74 = sphi 0, %s72
      %s75 = sphi 0, %s74
      %s89 = sphi 0, %s75
      %s93 = sphi 0, %s93
      %s95 = sphi 0, %s93
      %s96 = sphi 0, %s95
      %s110 = sphi 0, %s96
      %s116 = sphi 0, %s118
      %s119 = sphi 0, %s116
      %s120 = sphi 0, %s119
      %s136 = sphi 0, %s120
      %s142 = sphi 0, %s144
      %s145 = sphi 0, %s142
      %s146 = sphi 0, %s145
      %s162 = sphi 0, %s146
      %s168 = sphi 0, %s170
      %s171 = sphi 0, %s168
      %s172 = sphi 0, %s171
      %s188 = sphi 0, %s172
      %s194 = sphi 0, %s196
      %s197 = sphi 0, %s194
      %s198 = sphi 0, %s197
      %s214 = sphi 0, %s198
    $region4: #{buding_attention_forward.1} parent=1 // loop_header_branch
      %20 = sbr.rel (%p18) target = $region8
    $region5: #{buding_attention_forward.1} parent=1 // loop_body
      %s22 = ssub.s32 %s17, 1
      %s23 = ssub.s32 %s17, 2
      %s24 = sadd.s32 %s17, 1
      %s25 = ssub.s32 %s17, %s24
      %p26 = scmp.eq.s32.totalorder %s25, 0
      %s28 = sadd.s32 %s27, 1
      %s29 = scalar_select %p26, %s27, %s28
      %p32 = pneg %p26
      %p33 = scmp.eq.s32.totalorder %s17, 1
      %p34 = por %p32, %p33
      %p35 = scmp.ne.s32.totalorder %s27, %s30
      %p36 = scmp.eq.s32.totalorder %s17, 0
      %p37 = por %p35, %p36
      %p38 = scmp.ne.s32.totalorder %s27, %s30
      %p39 = scmp.eq.s32.totalorder %s22, 1
      %p40 = por %p38, %p39
      %p41 = scmp.ne.s32.totalorder %s30, %s31
      %p42 = scmp.eq.s32.totalorder %s22, 0
      %p43 = por %p41, %p42
      %p44 = scmp.ne.s32.totalorder %s30, %s31
      %p45 = scmp.eq.s32.totalorder %s23, 1
      %p46 = por %p44, %p45
      %p48 = scmp.ne.s32.totalorder %s31, %s47
      %p49 = scmp.eq.s32.totalorder %s23, 0
      %p50 = por %p48, %p49
      %s52 = sadd.s32 %s51, 1
      %p55 = scmp.eq.s32.totalorder %s17, 1
      %p56 = scmp.ne.s32.totalorder %s51, %s53
      %p57 = scmp.eq.s32.totalorder %s17, 0
      %p58 = por %p56, %p57
      %p59 = scmp.ne.s32.totalorder %s51, %s53
      %p60 = scmp.eq.s32.totalorder %s22, 1
      %p61 = por %p59, %p60
      %p62 = scmp.ne.s32.totalorder %s53, %s54
      %p63 = scmp.eq.s32.totalorder %s22, 0
      %p64 = por %p62, %p63
      %p65 = scmp.ne.s32.totalorder %s53, %s54
      %p66 = scmp.eq.s32.totalorder %s23, 1
      %p67 = por %p65, %p66
      %p69 = scmp.ne.s32.totalorder %s54, %s68
      %p70 = scmp.eq.s32.totalorder %s23, 0
      %p71 = por %p69, %p70
      %s73 = sadd.s32 %s72, 1
      %p76 = scmp.eq.s32.totalorder %s17, 1
      %p77 = scmp.ne.s32.totalorder %s72, %s74
      %p78 = scmp.eq.s32.totalorder %s17, 0
      %p79 = por %p77, %p78
      %p80 = scmp.ne.s32.totalorder %s72, %s74
      %p81 = scmp.eq.s32.totalorder %s22, 1
      %p82 = por %p80, %p81
      %p83 = scmp.ne.s32.totalorder %s74, %s75
      %p84 = scmp.eq.s32.totalorder %s22, 0
      %p85 = por %p83, %p84
      %p86 = scmp.ne.s32.totalorder %s74, %s75
      %p87 = scmp.eq.s32.totalorder %s23, 1
      %p88 = por %p86, %p87
      %p90 = scmp.ne.s32.totalorder %s75, %s89
      %p91 = scmp.eq.s32.totalorder %s23, 0
      %p92 = por %p90, %p91
      %s94 = sadd.s32 %s93, 1
      %p97 = scmp.eq.s32.totalorder %s17, 1
      %p98 = scmp.ne.s32.totalorder %s93, %s95
      %p99 = scmp.eq.s32.totalorder %s17, 0
      %p100 = por %p98, %p99
      %p101 = scmp.ne.s32.totalorder %s93, %s95
      %p102 = scmp.eq.s32.totalorder %s22, 1
      %p103 = por %p101, %p102
      %p104 = scmp.ne.s32.totalorder %s95, %s96
      %p105 = scmp.eq.s32.totalorder %s22, 0
      %p106 = por %p104, %p105
      %p107 = scmp.ne.s32.totalorder %s95, %s96
      %p108 = scmp.eq.s32.totalorder %s23, 1
      %p109 = por %p107, %p108
      %p111 = scmp.ne.s32.totalorder %s96, %s110
      %p112 = scmp.eq.s32.totalorder %s23, 0
      %p113 = por %p111, %p112
      %s114 = ssub.s32 %s17, %s24
      %p115 = scmp.eq.s32.totalorder %s114, 0
      %s117 = sadd.s32 %s116, 1
      %s118 = scalar_select %p115, %s116, %s117
      %p121 = pneg %p115
      %p122 = scmp.eq.s32.totalorder %s17, 1
      %p123 = por %p121, %p122
      %p124 = scmp.ne.s32.totalorder %s116, %s119
      %p125 = scmp.eq.s32.totalorder %s17, 0
      %p126 = por %p124, %p125
      %p127 = scmp.ne.s32.totalorder %s116, %s119
      %p128 = scmp.eq.s32.totalorder %s22, 1
      %p129 = por %p127, %p128
      %p130 = scmp.ne.s32.totalorder %s119, %s120
      %p131 = scmp.eq.s32.totalorder %s22, 0
      %p132 = por %p130, %p131
      %p133 = scmp.ne.s32.totalorder %s119, %s120
      %p134 = scmp.eq.s32.totalorder %s23, 1
      %p135 = por %p133, %p134
      %p137 = scmp.ne.s32.totalorder %s120, %s136
      %p138 = scmp.eq.s32.totalorder %s23, 0
      %p139 = por %p137, %p138
      %s140 = ssub.s32 %s17, %s24
      %p141 = scmp.eq.s32.totalorder %s140, 0
      %s143 = sadd.s32 %s142, 1
      %s144 = scalar_select %p141, %s142, %s143
      %p147 = pneg %p141
      %p148 = scmp.eq.s32.totalorder %s17, 1
      %p149 = por %p147, %p148
      %p150 = scmp.ne.s32.totalorder %s142, %s145
      %p151 = scmp.eq.s32.totalorder %s17, 0
      %p152 = por %p150, %p151
      %p153 = scmp.ne.s32.totalorder %s142, %s145
      %p154 = scmp.eq.s32.totalorder %s22, 1
      %p155 = por %p153, %p154
      %p156 = scmp.ne.s32.totalorder %s145, %s146
      %p157 = scmp.eq.s32.totalorder %s22, 0
      %p158 = por %p156, %p157
      %p159 = scmp.ne.s32.totalorder %s145, %s146
      %p160 = scmp.eq.s32.totalorder %s23, 1
      %p161 = por %p159, %p160
      %p163 = scmp.ne.s32.totalorder %s146, %s162
      %p164 = scmp.eq.s32.totalorder %s23, 0
      %p165 = por %p163, %p164
      %s166 = ssub.s32 %s17, %s24
      %p167 = scmp.eq.s32.totalorder %s166, 0
      %s169 = sadd.s32 %s168, 1
      %s170 = scalar_select %p167, %s168, %s169
      %p173 = pneg %p167
      %p174 = scmp.eq.s32.totalorder %s17, 1
      %p175 = por %p173, %p174
      %p176 = scmp.ne.s32.totalorder %s168, %s171
      %p177 = scmp.eq.s32.totalorder %s17, 0
      %p178 = por %p176, %p177
      %p179 = scmp.ne.s32.totalorder %s168, %s171
      %p180 = scmp.eq.s32.totalorder %s22, 1
      %p181 = por %p179, %p180
      %p182 = scmp.ne.s32.totalorder %s171, %s172
      %p183 = scmp.eq.s32.totalorder %s22, 0
      %p184 = por %p182, %p183
      %p185 = scmp.ne.s32.totalorder %s171, %s172
      %p186 = scmp.eq.s32.totalorder %s23, 1
      %p187 = por %p185, %p186
      %p189 = scmp.ne.s32.totalorder %s172, %s188
      %p190 = scmp.eq.s32.totalorder %s23, 0
      %p191 = por %p189, %p190
      %s192 = ssub.s32 %s17, %s24
      %p193 = scmp.eq.s32.totalorder %s192, 0
      %s195 = sadd.s32 %s194, 1
      %s196 = scalar_select %p193, %s194, %s195
      %p199 = pneg %p193
      %p200 = scmp.eq.s32.totalorder %s17, 1
      %p201 = por %p199, %p200
      %p202 = scmp.ne.s32.totalorder %s194, %s197
      %p203 = scmp.eq.s32.totalorder %s17, 0
      %p204 = por %p202, %p203
      %p205 = scmp.ne.s32.totalorder %s194, %s197
      %p206 = scmp.eq.s32.totalorder %s22, 1
      %p207 = por %p205, %p206
      %p208 = scmp.ne.s32.totalorder %s197, %s198
      %p209 = scmp.eq.s32.totalorder %s22, 0
      %p210 = por %p208, %p209
      %p211 = scmp.ne.s32.totalorder %s197, %s198
      %p212 = scmp.eq.s32.totalorder %s23, 1
      %p213 = por %p211, %p212
      %p215 = scmp.ne.s32.totalorder %s198, %s214
      %p216 = scmp.eq.s32.totalorder %s23, 0
      %p217 = por %p215, %p216
      %p218 = scmp.le.s32.totalorder 1, %s17
      %p219 = scmp.lt.s32.totalorder %s17, 3
      %p220 = pnand %p218, %p219
      %p221 = pneg %p220
      // Predicated region
      $region9: #{buding_attention_forward.1} parent=5 // pred_check
        _
      $region10: #{buding_attention_forward.1} parent=5 // pred_check_branch
        %223 = sbr.rel (%p220) target = $region12
      $region11: #{buding_attention_forward.1} parent=5 // pred_region
        %s224 = ssub.s32 %s17, 1
        // Predicated region
        $region13: #{buding_attention_forward.1} parent=11 // pred_check
          %p225 = pneg %p64
        $region14: #{buding_attention_forward.1} parent=11 // pred_check_branch
          %227 = sbr.rel (%p225) target = $region16
        $region15: #{buding_attention_forward.1} parent=11 // pred_region
          %s229 = ssub.s32 8192, 8192
          %230 = vsyncadd [#allocation3], %s229
          %s231 = sshll.u32 [#allocation2], 4
          %s232 = int_to_ptr.vmem [resolvable:$true] %s231
          %237 = dma.hbm_to_vmem [thread:$0]  %s1, 8192, %s232, [#allocation3], 256, 256, 16
        $region16: #{buding_attention_forward.1} parent=11 // pred_fallthru
          _
        // Predicated region
        $region17: #{buding_attention_forward.1} parent=11 // pred_check
          %p238 = pneg %p85
        $region18: #{buding_attention_forward.1} parent=11 // pred_check_branch
          %240 = sbr.rel (%p238) target = $region20
        $region19: #{buding_attention_forward.1} parent=11 // pred_region
          _
        $region20: #{buding_attention_forward.1} parent=11 // pred_fallthru
          _
        // Predicated region
        $region21: #{buding_attention_forward.1} parent=11 // pred_check
          %p241 = pneg %p106
        $region22: #{buding_attention_forward.1} parent=11 // pred_check_branch
          %243 = sbr.rel (%p241) target = $region24
        $region23: #{buding_attention_forward.1} parent=11 // pred_region
          _
        $region24: #{buding_attention_forward.1} parent=11 // pred_fallthru
          _
      $region12: #{buding_attention_forward.1} parent=5 // pred_fallthru
        _
      %p244 = scmp.lt.s32.totalorder %s17, 2
      // Predicated region
      $region25: #{buding_attention_forward.1} parent=5 // pred_check
        %p245 = pneg %p244
      $region26: #{buding_attention_forward.1} parent=5 // pred_check_branch
        %247 = sbr.rel (%p245) target = $region28
      $region27: #{buding_attention_forward.1} parent=5 // pred_region
        // Predicated region
        $region29: #{buding_attention_forward.1} parent=27 // pred_check
          %p248 = pneg %p37
        $region30: #{buding_attention_forward.1} parent=27 // pred_check_branch
          %250 = sbr.rel (%p248) target = $region32
        $region31: #{buding_attention_forward.1} parent=27 // pred_region
          %p251 = scmp.lt.s32.totalorder %s17, 1
          %s252 = scalar_select %p251, %s17, 1
          %s253 = smul.addr %s252, 2
          %s254 = smul.addr %s253, 8
          %s255 = scalar_lea.vmem %s0, %s254
        $region32: #{buding_attention_forward.1} parent=27 // pred_fallthru
          _
        // Predicated region
        $region33: #{buding_attention_forward.1} parent=27 // pred_check
          %p256 = pneg %p126
        $region34: #{buding_attention_forward.1} parent=27 // pred_check_branch
          %258 = sbr.rel (%p256) target = $region36
        $region35: #{buding_attention_forward.1} parent=27 // pred_region
          %p259 = scmp.lt.s32.totalorder %s17, 1
          %s260 = scalar_select %p259, %s17, 1
          %s261 = smul.addr %s260, 8
          %s262 = scalar_lea.vmem %s4, %s261
        $region36: #{buding_attention_forward.1} parent=27 // pred_fallthru
          _
        // Predicated region
        $region37: #{buding_attention_forward.1} parent=27 // pred_check
          %p263 = pneg %p152
        $region38: #{buding_attention_forward.1} parent=27 // pred_check_branch
          %265 = sbr.rel (%p263) target = $region40
        $region39: #{buding_attention_forward.1} parent=27 // pred_region
          %p266 = scmp.lt.s32.totalorder %s17, 1
          %s267 = scalar_select %p266, %s17, 1
          %s268 = smul.addr %s267, 8
          %s269 = scalar_lea.vmem %s5, %s268
        $region40: #{buding_attention_forward.1} parent=27 // pred_fallthru
          _
        // Predicated region
        $region41: #{buding_attention_forward.1} parent=27 // pred_check
          %p270 = pneg %p178
        $region42: #{buding_attention_forward.1} parent=27 // pred_check_branch
          %272 = sbr.rel (%p270) target = $region44
        $region43: #{buding_attention_forward.1} parent=27 // pred_region
          %p273 = scmp.lt.s32.totalorder %s17, 1
          %s274 = scalar_select %p273, %s17, 1
          %s275 = smul.addr %s274, 8
          %s276 = scalar_lea.vmem %s6, %s275
        $region44: #{buding_attention_forward.1} parent=27 // pred_fallthru
          _
      $region28: #{buding_attention_forward.1} parent=5 // pred_fallthru
        _
      %p277 = scmp.le.s32.totalorder 1, %s17
      %p278 = scmp.lt.s32.totalorder %s17, 3
      %p279 = pnand %p277, %p278
      %p280 = pneg %p279
      // Predicated region
      $region45: #{buding_attention_forward.1} parent=5 // pred_check
        _
      $region46: #{buding_attention_forward.1} parent=5 // pred_check_branch
        %282 = sbr.rel (%p279) target = $region48
      $region47: #{buding_attention_forward.1} parent=5 // pred_region
        %s283 = ssub.s32 %s17, 1
        // Predicated region
        $region49: #{buding_attention_forward.1} parent=47 // pred_check
          %p284 = pneg %p64
        $region50: #{buding_attention_forward.1} parent=47 // pred_check_branch
          %286 = sbr.rel (%p284) target = $region52
        $region51: #{buding_attention_forward.1} parent=47 // pred_region
          %287 = dma.done [#allocation3], 8192
        $region52: #{buding_attention_forward.1} parent=47 // pred_fallthru
          _
        %p288 = scmp.lt.s32.totalorder %s22, 1
        %s289 = scalar_select %p288, %s22, 1
        %s290 = smul.addr %s289, 2
        %s291 = smul.addr %s290, 8
        %s292 = scalar_lea.vmem %s0, %s291
        %p293 = pneg %p43
        %p294 = pneg %p40
        %p295 = pneg %p64
        %p296 = pneg %p61
        %p297 = pneg %p85
        %p298 = pneg %p82
        %p299 = pneg %p106
        %p300 = pneg %p103
        %p301 = scmp.lt.s32.totalorder %s22, 1
        %s302 = scalar_select %p301, %s22, 1
        %s303 = smul.addr %s302, 8
        %s304 = scalar_lea.vmem %s4, %s303
        %p305 = pneg %p132
        %p306 = pneg %p129
        %p307 = scmp.lt.s32.totalorder %s22, 1
        %s308 = scalar_select %p307, %s22, 1
        %s309 = smul.addr %s308, 8
        %s310 = scalar_lea.vmem %s5, %s309
        %p311 = pneg %p158
        %p312 = pneg %p155
        %p313 = scmp.lt.s32.totalorder %s22, 1
        %s314 = scalar_select %p313, %s22, 1
        %s315 = smul.addr %s314, 8
        %s316 = scalar_lea.vmem %s6, %s315
        %p317 = pneg %p184
        %p318 = pneg %p181
        %p319 = pneg %p210
        %p320 = pneg %p207
        %s321 = sand.u32 %s197, 1
        %s322 = scalar_lea.sflag [#allocation4], %s321
        %s323 = sand.u32 %s197, 1
        %s324 = smul.addr %s323, 16
        %s325 = scalar_lea.vmem [#allocation5], %s324
        %p326 = scmp.lt.s32.totalorder %s22, 1
        %s327 = scalar_select %p326, %s22, 1
        %s328 = smul.addr %s327, 2
        %s329 = smul.addr %s328, 8
        %s330 = scalar_lea.vmem %s0, %s329
        %p331 = scmp.lt.s32.totalorder %s22, 1
        %s332 = scalar_select %p331, %s22, 1
        %s333 = smul.addr %s332, 8
        %s334 = scalar_lea.vmem %s4, %s333
        %p335 = scmp.lt.s32.totalorder %s22, 1
        %s336 = scalar_select %p335, %s22, 1
        %s337 = smul.addr %s336, 8
        %s338 = scalar_lea.vmem %s5, %s337
        %p339 = scmp.lt.s32.totalorder %s22, 1
        %s340 = scalar_select %p339, %s22, 1
        %s341 = smul.addr %s340, 8
        %s342 = scalar_lea.vmem %s6, %s341
        %v344 = vld [vmem:[%s330] sm:$0xff]
        %v345 = vld [vmem:[%s330 + $0x8] sm:$0xff]
        %v346 = vpack.c.bf16 %v344, %v344
        %v347 = vpack.c.bf16 %v345, %v345
        %v348 = vld [vmem:[#allocation2] sm:$0xff]
        %v349 = vld [vmem:[#allocation2 + $0x8] sm:$0xff]
        %v350 = vld [vmem:[#allocation2 + $0x10] sm:$0xff]
        %v351 = vld [vmem:[#allocation2 + $0x18] sm:$0xff]
        %v352 = vld [vmem:[#allocation2 + $0x20] sm:$0xff]
        %v353 = vld [vmem:[#allocation2 + $0x28] sm:$0xff]
        %v354 = vld [vmem:[#allocation2 + $0x30] sm:$0xff]
        %v355 = vld [vmem:[#allocation2 + $0x38] sm:$0xff]
        %v356 = vld [vmem:[#allocation2 + $0x40] sm:$0xff]
        %v357 = vld [vmem:[#allocation2 + $0x48] sm:$0xff]
        %v358 = vld [vmem:[#allocation2 + $0x50] sm:$0xff]
        %v359 = vld [vmem:[#allocation2 + $0x58] sm:$0xff]
        %v360 = vld [vmem:[#allocation2 + $0x60] sm:$0xff]
        %v361 = vld [vmem:[#allocation2 + $0x68] sm:$0xff]
        %v362 = vld [vmem:[#allocation2 + $0x70] sm:$0xff]
        %v363 = vld [vmem:[#allocation2 + $0x78] sm:$0xff]
        %v364 = vld [vmem:[#allocation2 + $0x80] sm:$0xff]
        %v365 = vld [vmem:[#allocation2 + $0x88] sm:$0xff]
        %v366 = vld [vmem:[#allocation2 + $0x90] sm:$0xff]
        %v367 = vld [vmem:[#allocation2 + $0x98] sm:$0xff]
        %v368 = vld [vmem:[#allocation2 + $0xa0] sm:$0xff]
        %v369 = vld [vmem:[#allocation2 + $0xa8] sm:$0xff]
        %v370 = vld [vmem:[#allocation2 + $0xb0] sm:$0xff]
        %v371 = vld [vmem:[#allocation2 + $0xb8] sm:$0xff]
        %v372 = vld [vmem:[#allocation2 + $0xc0] sm:$0xff]
        %v373 = vld [vmem:[#allocation2 + $0xc8] sm:$0xff]
        %v374 = vld [vmem:[#allocation2 + $0xd0] sm:$0xff]
        %v375 = vld [vmem:[#allocation2 + $0xd8] sm:$0xff]
        %v376 = vld [vmem:[#allocation2 + $0xe0] sm:$0xff]
        %v377 = vld [vmem:[#allocation2 + $0xe8] sm:$0xff]
        %v378 = vld [vmem:[#allocation2 + $0xf0] sm:$0xff]
        %v379 = vld [vmem:[#allocation2 + $0xf8] sm:$0xff]
        %v380 = vld [vmem:[#allocation2 + $0x100] sm:$0xff]
        %v381 = vld [vmem:[#allocation2 + $0x108] sm:$0xff]
        %v382 = vld [vmem:[#allocation2 + $0x110] sm:$0xff]
        %v383 = vld [vmem:[#allocation2 + $0x118] sm:$0xff]
        %v384 = vld [vmem:[#allocation2 + $0x120] sm:$0xff]
        %v385 = vld [vmem:[#allocation2 + $0x128] sm:$0xff]
        %v386 = vld [vmem:[#allocation2 + $0x130] sm:$0xff]
        %v387 = vld [vmem:[#allocation2 + $0x138] sm:$0xff]
        %v388 = vld [vmem:[#allocation2 + $0x140] sm:$0xff]
        %v389 = vld [vmem:[#allocation2 + $0x148] sm:$0xff]
        %v390 = vld [vmem:[#allocation2 + $0x150] sm:$0xff]
        %v391 = vld [vmem:[#allocation2 + $0x158] sm:$0xff]
        %v392 = vld [vmem:[#allocation2 + $0x160] sm:$0xff]
        %v393 = vld [vmem:[#allocation2 + $0x168] sm:$0xff]
        %v394 = vld [vmem:[#allocation2 + $0x170] sm:$0xff]
        %v395 = vld [vmem:[#allocation2 + $0x178] sm:$0xff]
        %v396 = vld [vmem:[#allocation2 + $0x180] sm:$0xff]
        %v397 = vld [vmem:[#allocation2 + $0x188] sm:$0xff]
        %v398 = vld [vmem:[#allocation2 + $0x190] sm:$0xff]
        %v399 = vld [vmem:[#allocation2 + $0x198] sm:$0xff]
        %v400 = vld [vmem:[#allocation2 + $0x1a0] sm:$0xff]
        %v401 = vld [vmem:[#allocation2 + $0x1a8] sm:$0xff]
        %v402 = vld [vmem:[#allocation2 + $0x1b0] sm:$0xff]
        %v403 = vld [vmem:[#allocation2 + $0x1b8] sm:$0xff]
        %v404 = vld [vmem:[#allocation2 + $0x1c0] sm:$0xff]
        %v405 = vld [vmem:[#allocation2 + $0x1c8] sm:$0xff]
        %v406 = vld [vmem:[#allocation2 + $0x1d0] sm:$0xff]
        %v407 = vld [vmem:[#allocation2 + $0x1d8] sm:$0xff]
        %v408 = vld [vmem:[#allocation2 + $0x1e0] sm:$0xff]
        %v409 = vld [vmem:[#allocation2 + $0x1e8] sm:$0xff]
        %v410 = vld [vmem:[#allocation2 + $0x1f0] sm:$0xff]
        %v411 = vld [vmem:[#allocation2 + $0x1f8] sm:$0xff]
        %v412 = vld [vmem:[%s2] sm:$0xf]
        %v414 = vlaneseq
        %v415 = vshrl.u32 %v414, 7
        %v416 = vsub.s32 0, %v415
        %v417 = vrot.slane %v412, %v416
        %v418 = vlaneseq
        %v419 = vshrl.u32 %v418, 7
        %v420 = vsub.s32 1, %v419
        %v421 = vrot.slane %v412, %v420
        %v422 = vlaneseq
        %v423 = vshrl.u32 %v422, 7
        %v424 = vsub.s32 2, %v423
        %v425 = vrot.slane %v412, %v424
        %v426 = vlaneseq
        %v427 = vshrl.u32 %v426, 7
        %v428 = vsub.s32 3, %v427
        %v429 = vrot.slane %v412, %v428
        %v498 = vunpack.c.l.b16 %v348
        %v499 = vunpack.c.h.b16 %v348
        %v500 = vunpack.c.l.b16 %v349
        %v501 = vunpack.c.h.b16 %v349
        %v502 = vunpack.c.l.b16 %v350
        %v503 = vunpack.c.h.b16 %v350
        %v504 = vunpack.c.l.b16 %v351
        %v505 = vunpack.c.h.b16 %v351
        %v506 = vunpack.c.l.b16 %v352
        %v507 = vunpack.c.h.b16 %v352
        %v508 = vunpack.c.l.b16 %v353
        %v509 = vunpack.c.h.b16 %v353
        %v510 = vunpack.c.l.b16 %v354
        %v511 = vunpack.c.h.b16 %v354
        %v512 = vunpack.c.l.b16 %v355
        %v513 = vunpack.c.h.b16 %v355
        %v514 = vunpack.c.l.b16 %v356
        %v515 = vunpack.c.h.b16 %v356
        %v516 = vunpack.c.l.b16 %v357
        %v517 = vunpack.c.h.b16 %v357
        %v518 = vunpack.c.l.b16 %v358
        %v519 = vunpack.c.h.b16 %v358
        %v520 = vunpack.c.l.b16 %v359
        %v521 = vunpack.c.h.b16 %v359
        %v522 = vunpack.c.l.b16 %v360
        %v523 = vunpack.c.h.b16 %v360
        %v524 = vunpack.c.l.b16 %v361
        %v525 = vunpack.c.h.b16 %v361
        %v526 = vunpack.c.l.b16 %v362
        %v527 = vunpack.c.h.b16 %v362
        %v528 = vunpack.c.l.b16 %v363
        %v529 = vunpack.c.h.b16 %v363
        %v530 = vunpack.c.l.b16 %v364
        %v531 = vunpack.c.h.b16 %v364
        %v532 = vunpack.c.l.b16 %v365
        %v533 = vunpack.c.h.b16 %v365
        %v534 = vunpack.c.l.b16 %v366
        %v535 = vunpack.c.h.b16 %v366
        %v536 = vunpack.c.l.b16 %v367
        %v537 = vunpack.c.h.b16 %v367
        %v538 = vunpack.c.l.b16 %v368
        %v539 = vunpack.c.h.b16 %v368
        %v540 = vunpack.c.l.b16 %v369
        %v541 = vunpack.c.h.b16 %v369
        %v542 = vunpack.c.l.b16 %v370
        %v543 = vunpack.c.h.b16 %v370
        %v544 = vunpack.c.l.b16 %v371
        %v545 = vunpack.c.h.b16 %v371
        %v546 = vunpack.c.l.b16 %v372
        %v547 = vunpack.c.h.b16 %v372
        %v548 = vunpack.c.l.b16 %v373
        %v549 = vunpack.c.h.b16 %v373
        %v550 = vunpack.c.l.b16 %v374
        %v551 = vunpack.c.h.b16 %v374
        %v552 = vunpack.c.l.b16 %v375
        %v553 = vunpack.c.h.b16 %v375
        %v554 = vunpack.c.l.b16 %v376
        %v555 = vunpack.c.h.b16 %v376
        %v556 = vunpack.c.l.b16 %v377
        %v557 = vunpack.c.h.b16 %v377
        %v558 = vunpack.c.l.b16 %v378
        %v559 = vunpack.c.h.b16 %v378
        %v560 = vunpack.c.l.b16 %v379
        %v561 = vunpack.c.h.b16 %v379
        %v562 = vunpack.c.l.b16 %v380
        %v563 = vunpack.c.h.b16 %v380
        %v564 = vunpack.c.l.b16 %v381
        %v565 = vunpack.c.h.b16 %v381
        %v566 = vunpack.c.l.b16 %v382
        %v567 = vunpack.c.h.b16 %v382
        %v568 = vunpack.c.l.b16 %v383
        %v569 = vunpack.c.h.b16 %v383
        %v570 = vunpack.c.l.b16 %v384
        %v571 = vunpack.c.h.b16 %v384
        %v572 = vunpack.c.l.b16 %v385
        %v573 = vunpack.c.h.b16 %v385
        %v574 = vunpack.c.l.b16 %v386
        %v575 = vunpack.c.h.b16 %v386
        %v576 = vunpack.c.l.b16 %v387
        %v577 = vunpack.c.h.b16 %v387
        %v578 = vunpack.c.l.b16 %v388
        %v579 = vunpack.c.h.b16 %v388
        %v580 = vunpack.c.l.b16 %v389
        %v581 = vunpack.c.h.b16 %v389
        %v582 = vunpack.c.l.b16 %v390
        %v583 = vunpack.c.h.b16 %v390
        %v584 = vunpack.c.l.b16 %v391
        %v585 = vunpack.c.h.b16 %v391
        %v586 = vunpack.c.l.b16 %v392
        %v587 = vunpack.c.h.b16 %v392
        %v588 = vunpack.c.l.b16 %v393
        %v589 = vunpack.c.h.b16 %v393
        %v590 = vunpack.c.l.b16 %v394
        %v591 = vunpack.c.h.b16 %v394
        %v592 = vunpack.c.l.b16 %v395
        %v593 = vunpack.c.h.b16 %v395
        %v594 = vunpack.c.l.b16 %v396
        %v595 = vunpack.c.h.b16 %v396
        %v596 = vunpack.c.l.b16 %v397
        %v597 = vunpack.c.h.b16 %v397
        %v598 = vunpack.c.l.b16 %v398
        %v599 = vunpack.c.h.b16 %v398
        %v600 = vunpack.c.l.b16 %v399
        %v601 = vunpack.c.h.b16 %v399
        %v602 = vunpack.c.l.b16 %v400
        %v603 = vunpack.c.h.b16 %v400
        %v604 = vunpack.c.l.b16 %v401
        %v605 = vunpack.c.h.b16 %v401
        %v606 = vunpack.c.l.b16 %v402
        %v607 = vunpack.c.h.b16 %v402
        %v608 = vunpack.c.l.b16 %v403
        %v609 = vunpack.c.h.b16 %v403
        %v610 = vunpack.c.l.b16 %v404
        %v611 = vunpack.c.h.b16 %v404
        %v612 = vunpack.c.l.b16 %v405
        %v613 = vunpack.c.h.b16 %v405
        %v614 = vunpack.c.l.b16 %v406
        %v615 = vunpack.c.h.b16 %v406
        %v616 = vunpack.c.l.b16 %v407
        %v617 = vunpack.c.h.b16 %v407
        %v618 = vunpack.c.l.b16 %v408
        %v619 = vunpack.c.h.b16 %v408
        %v620 = vunpack.c.l.b16 %v409
        %v621 = vunpack.c.h.b16 %v409
        %v622 = vunpack.c.l.b16 %v410
        %v623 = vunpack.c.h.b16 %v410
        %v624 = vunpack.c.l.b16 %v411
        %v625 = vunpack.c.h.b16 %v411
        %v626 = vpack.c.b16 %v502, %v498
        %v627 = vpack.c.b16 %v503, %v499
        %v628 = vpack.c.b16 %v504, %v500
        %v629 = vpack.c.b16 %v505, %v501
        %v630 = vpack.c.b16 %v510, %v506
        %v631 = vpack.c.b16 %v511, %v507
        %v632 = vpack.c.b16 %v512, %v508
        %v633 = vpack.c.b16 %v513, %v509
        %v634 = vpack.c.b16 %v518, %v514
        %v635 = vpack.c.b16 %v519, %v515
        %v636 = vpack.c.b16 %v520, %v516
        %v637 = vpack.c.b16 %v521, %v517
        %v638 = vpack.c.b16 %v526, %v522
        %v639 = vpack.c.b16 %v527, %v523
        %v640 = vpack.c.b16 %v528, %v524
        %v641 = vpack.c.b16 %v529, %v525
        %v642 = vpack.c.b16 %v534, %v530
        %v643 = vpack.c.b16 %v535, %v531
        %v644 = vpack.c.b16 %v536, %v532
        %v645 = vpack.c.b16 %v537, %v533
        %v646 = vpack.c.b16 %v542, %v538
        %v647 = vpack.c.b16 %v543, %v539
        %v648 = vpack.c.b16 %v544, %v540
        %v649 = vpack.c.b16 %v545, %v541
        %v650 = vpack.c.b16 %v550, %v546
        %v651 = vpack.c.b16 %v551, %v547
        %v652 = vpack.c.b16 %v552, %v548
        %v653 = vpack.c.b16 %v553, %v549
        %v654 = vpack.c.b16 %v558, %v554
        %v655 = vpack.c.b16 %v559, %v555
        %v656 = vpack.c.b16 %v560, %v556
        %v657 = vpack.c.b16 %v561, %v557
        %v658 = vpack.c.b16 %v566, %v562
        %v659 = vpack.c.b16 %v567, %v563
        %v660 = vpack.c.b16 %v568, %v564
        %v661 = vpack.c.b16 %v569, %v565
        %v662 = vpack.c.b16 %v574, %v570
        %v663 = vpack.c.b16 %v575, %v571
        %v664 = vpack.c.b16 %v576, %v572
        %v665 = vpack.c.b16 %v577, %v573
        %v666 = vpack.c.b16 %v582, %v578
        %v667 = vpack.c.b16 %v583, %v579
        %v668 = vpack.c.b16 %v584, %v580
        %v669 = vpack.c.b16 %v585, %v581
        %v670 = vpack.c.b16 %v590, %v586
        %v671 = vpack.c.b16 %v591, %v587
        %v672 = vpack.c.b16 %v592, %v588
        %v673 = vpack.c.b16 %v593, %v589
        %v674 = vpack.c.b16 %v598, %v594
        %v675 = vpack.c.b16 %v599, %v595
        %v676 = vpack.c.b16 %v600, %v596
        %v677 = vpack.c.b16 %v601, %v597
        %v678 = vpack.c.b16 %v606, %v602
        %v679 = vpack.c.b16 %v607, %v603
        %v680 = vpack.c.b16 %v608, %v604
        %v681 = vpack.c.b16 %v609, %v605
        %v682 = vpack.c.b16 %v614, %v610
        %v683 = vpack.c.b16 %v615, %v611
        %v684 = vpack.c.b16 %v616, %v612
        %v685 = vpack.c.b16 %v617, %v613
        %v686 = vpack.c.b16 %v622, %v618
        %v687 = vpack.c.b16 %v623, %v619
        %v688 = vpack.c.b16 %v624, %v620
        %v689 = vpack.c.b16 %v625, %v621
        %754 = vmatprep.subr.bf16.mxu0 %v627
        %755 = vmatpush1.bf16.msra.mxu0 %v626
        %756 = vmatprep.subr.bf16.mxu0 %v631
        %757 = vmatpush1.bf16.msra.mxu0 %v630
        %758 = vmatprep.subr.bf16.mxu0 %v635
        %759 = vmatpush1.bf16.msra.mxu0 %v634
        %760 = vmatprep.subr.bf16.mxu0 %v639
        %761 = vmatpush1.bf16.msra.mxu0 %v638
        %762 = vmatprep.subr.bf16.mxu0 %v643
        %763 = vmatpush1.bf16.msra.mxu0 %v642
        %764 = vmatprep.subr.bf16.mxu0 %v647
        %765 = vmatpush1.bf16.msra.mxu0 %v646
        %766 = vmatprep.subr.bf16.mxu0 %v651
        %767 = vmatpush1.bf16.msra.mxu0 %v650
        %768 = vmatprep.subr.bf16.mxu0 %v655
        %769 = vmatpush1.bf16.msra.mxu0 %v654
        %770 = vmatprep.subr.bf16.mxu0 %v659
        %771 = vmatpush1.bf16.msra.mxu0 %v658
        %772 = vmatprep.subr.bf16.mxu0 %v663
        %773 = vmatpush1.bf16.msra.mxu0 %v662
        %774 = vmatprep.subr.bf16.mxu0 %v667
        %775 = vmatpush1.bf16.msra.mxu0 %v666
        %776 = vmatprep.subr.bf16.mxu0 %v671
        %777 = vmatpush1.bf16.msra.mxu0 %v670
        %778 = vmatprep.subr.bf16.mxu0 %v675
        %779 = vmatpush1.bf16.msra.mxu0 %v674
        %780 = vmatprep.subr.bf16.mxu0 %v679
        %781 = vmatpush1.bf16.msra.mxu0 %v678
        %782 = vmatprep.subr.bf16.mxu0 %v683
        %783 = vmatpush1.bf16.msra.mxu0 %v682
        %784 = vmatprep.subr.bf16.mxu0 %v687
        %785 = vmatpush1.bf16.msra.mxu0 %v686
        %786 = vmatprep.mubr.bf16.mxu0 %v347
        %787 = vmatmul.mubr.bf16.gmra.mrb[0].mxu0 %v346
        %v788 = vpop.f32.mrb[0].mxu0
        %v789 = vadd.f32 %v417, %v788
        %v790 = vpop.f32.mrb[0].mxu0
        %v791 = vadd.f32 %v421, %v790
        %v792 = vpop.f32.mrb[0].mxu0
        %v793 = vpop.f32.mrb[0].mxu0
        %794 = vdwg.mxu0
        %795 = vmatprep.subr.bf16.mxu0 %v629
        %796 = vmatpush1.bf16.msra.mxu0 %v628
        %797 = vmatprep.subr.bf16.mxu0 %v633
        %798 = vmatpush1.bf16.msra.mxu0 %v632
        %799 = vmatprep.subr.bf16.mxu0 %v637
        %800 = vmatpush1.bf16.msra.mxu0 %v636
        %801 = vmatprep.subr.bf16.mxu0 %v641
        %802 = vmatpush1.bf16.msra.mxu0 %v640
        %803 = vmatprep.subr.bf16.mxu0 %v645
        %804 = vmatpush1.bf16.msra.mxu0 %v644
        %805 = vmatprep.subr.bf16.mxu0 %v649
        %806 = vmatpush1.bf16.msra.mxu0 %v648
        %807 = vmatprep.subr.bf16.mxu0 %v653
        %808 = vmatpush1.bf16.msra.mxu0 %v652
        %809 = vmatprep.subr.bf16.mxu0 %v657
        %810 = vmatpush1.bf16.msra.mxu0 %v656
        %811 = vmatprep.subr.bf16.mxu0 %v661
        %812 = vmatpush1.bf16.msra.mxu0 %v660
        %813 = vmatprep.subr.bf16.mxu0 %v665
        %814 = vmatpush1.bf16.msra.mxu0 %v664
        %815 = vmatprep.subr.bf16.mxu0 %v669
        %816 = vmatpush1.bf16.msra.mxu0 %v668
        %817 = vmatprep.subr.bf16.mxu0 %v673
        %818 = vmatpush1.bf16.msra.mxu0 %v672
        %819 = vmatprep.subr.bf16.mxu0 %v677
        %820 = vmatpush1.bf16.msra.mxu0 %v676
        %821 = vmatprep.subr.bf16.mxu0 %v681
        %822 = vmatpush1.bf16.msra.mxu0 %v680
        %823 = vmatprep.subr.bf16.mxu0 %v685
        %824 = vmatpush1.bf16.msra.mxu0 %v684
        %825 = vmatprep.subr.bf16.mxu0 %v689
        %826 = vmatpush1.bf16.msra.mxu0 %v688
        %827 = vmatprep.mubr.bf16.mxu0 %v347
        %828 = vmatmul.mubr.bf16.gmra.mrb[0].mxu0 %v346
        %v829 = vpop.f32.mrb[0].mxu0
        %v830 = vadd.f32 %v425, %v829
        %v831 = vpop.f32.mrb[0].mxu0
        %v832 = vadd.f32 %v429, %v831
        %v833 = vpop.f32.mrb[0].mxu0
        %v834 = vpop.f32.mrb[0].mxu0
        %835 = vdwg.mxu0
        %v836 = vld [vmem:[%s338] sm:$0xff]
        %v837 = vld [vmem:[%s342] sm:$0xff]
        %v838 = vld [vmem:[%s334] sm:$0xff]
        %v839 = vmul.f32 %v830, %v836
        %840 = vrot.lane.b32.xlu0 %v830, 64
        %v841 = vpop.permute.xlu0 %840
        %v842 = vmul.f32 %v841, %v837
        %v843 = vadd.f32 %v839, %v842
        %v844 = vpack.c.bf16 %v843, %v843
        %v845 = vpack.c.bf16 %v832, %v832
        %v846 = vmul.f32 %v789, %v836
        %847 = vrot.lane.b32.xlu0 %v789, 64
        %v848 = vpop.permute.xlu0 %847
        %v849 = vmul.f32 %v848, %v837
        %v850 = vadd.f32 %v846, %v849
        %v851 = vpack.c.bf16 %v850, %v850
        %852 = vmatprep.subr.bf16.mxu0 0
        %853 = vmatpush1.bf16.xpose.msra.mxu0 %v844
        %854 = vmatprep.subr.bf16.mxu0 0
        %855 = vmatpush1.bf16.xpose.msra.mxu0 0
        %856 = vmatprep.subr.bf16.mxu0 0
        %857 = vmatpush1.bf16.xpose.msra.mxu0 0
        %858 = vmatprep.subr.bf16.mxu0 0
        %859 = vmatpush1.bf16.xpose.msra.mxu0 0
        %860 = vmatprep.subr.bf16.mxu0 0
        %861 = vmatpush1.bf16.xpose.msra.mxu0 0
        %862 = vmatprep.subr.bf16.mxu0 0
        %863 = vmatpush1.bf16.xpose.msra.mxu0 0
        %864 = vmatprep.subr.bf16.mxu0 0
        %865 = vmatpush1.bf16.xpose.msra.mxu0 0
        %866 = vmatprep.subr.bf16.mxu0 0
        %867 = vmatpush1.bf16.xpose.msra.mxu0 0
        %868 = vmatprep.subr.bf16.mxu0 0
        %869 = vmatpush1.bf16.xpose.msra.mxu0 0
        %870 = vmatprep.subr.bf16.mxu0 0
        %871 = vmatpush1.bf16.xpose.msra.mxu0 0
        %872 = vmatprep.subr.bf16.mxu0 0
        %873 = vmatpush1.bf16.xpose.msra.mxu0 0
        %874 = vmatprep.subr.bf16.mxu0 0
        %875 = vmatpush1.bf16.xpose.msra.mxu0 0
        %876 = vmatprep.subr.bf16.mxu0 0
        %877 = vmatpush1.bf16.xpose.msra.mxu0 0
        %878 = vmatprep.subr.bf16.mxu0 0
        %879 = vmatpush1.bf16.xpose.msra.mxu0 0
        %880 = vmatprep.subr.bf16.mxu0 0
        %881 = vmatpush1.bf16.xpose.msra.mxu0 0
        %882 = vmatprep.subr.bf16.mxu0 0
        %883 = vmatpush1.bf16.xpose.msra.mxu0 0
        %884 = vmatprep.mubr.bf16.mxu0 0
        %885 = vmatmul.mubr.bf16.gmra.mrb[0].mxu0 %v851
        %v886 = vpop.f32.mrb[0].mxu0
        %v887 = vadd.f32 %v838, %v886
        %v888 = vpop.f32.mrb[0].mxu0
        %v889 = vpop.f32.mrb[0].mxu0
        %v890 = vpop.f32.mrb[0].mxu0
        %891 = vdwg.mxu0
        %vm892 = vcmask 64512
        %v893 = vsel %vm892, %v887, -inf
        %894 = vmax.xlane.f32.xlu0 %v893
        %v895 = vpop.xlane.xlu0 %894
        %v896 = vsub.f32 %v887, %v895
        %v897 = vmul.f32 %v896, 1.442695
        %v898 = vpow.pop %v897
        %v899 = vsel %vm892, %v898, 0.0
        %900 = vadd.xlane.f32.xlu0 %v899
        %v901 = vpop.xlane.xlu0 %900
        %v902 = vrcp.pop %v901
        %v903 = vmul.f32 %v898, %v902
        %v904 = vpack.c.bf16 %v903, %v903
        %v906 = vsel %vm892, %v904, 0
        %vm908 = vcmask 1043456
        %v910 = vsel %vm908, %v845, 0
        %912 = vmatprep.subr.bf16.mxu0 0
        %913 = vmatpush1.bf16.msra.mxu0 %v910
        %914 = vmatprep.subr.bf16.mxu0 0
        %915 = vmatpush1.bf16.msra.mxu0 0
        %916 = vmatprep.subr.bf16.mxu0 0
        %917 = vmatpush1.bf16.msra.mxu0 0
        %918 = vmatprep.subr.bf16.mxu0 0
        %919 = vmatpush1.bf16.msra.mxu0 0
        %920 = vmatprep.subr.bf16.mxu0 0
        %921 = vmatpush1.bf16.msra.mxu0 0
        %922 = vmatprep.subr.bf16.mxu0 0
        %923 = vmatpush1.bf16.msra.mxu0 0
        %924 = vmatprep.subr.bf16.mxu0 0
        %925 = vmatpush1.bf16.msra.mxu0 0
        %926 = vmatprep.subr.bf16.mxu0 0
        %927 = vmatpush1.bf16.msra.mxu0 0
        %928 = vmatprep.subr.bf16.mxu0 0
        %929 = vmatpush1.bf16.msra.mxu0 0
        %930 = vmatprep.subr.bf16.mxu0 0
        %931 = vmatpush1.bf16.msra.mxu0 0
        %932 = vmatprep.subr.bf16.mxu0 0
        %933 = vmatpush1.bf16.msra.mxu0 0
        %934 = vmatprep.subr.bf16.mxu0 0
        %935 = vmatpush1.bf16.msra.mxu0 0
        %936 = vmatprep.subr.bf16.mxu0 0
        %937 = vmatpush1.bf16.msra.mxu0 0
        %938 = vmatprep.subr.bf16.mxu0 0
        %939 = vmatpush1.bf16.msra.mxu0 0
        %940 = vmatprep.subr.bf16.mxu0 0
        %941 = vmatpush1.bf16.msra.mxu0 0
        %942 = vmatprep.subr.bf16.mxu0 0
        %943 = vmatpush1.bf16.msra.mxu0 0
        %944 = vmatprep.mubr.bf16.mxu0 0
        %945 = vmatmul.mubr.bf16.gmra.mrb[0].mxu0 %v906
        %v946 = vpop.f32.mrb[0].mxu0
        %v947 = vadd.f32 0.0, %v946
        %v948 = vpop.f32.mrb[0].mxu0
        %v949 = vpop.f32.mrb[0].mxu0
        %v950 = vpop.f32.mrb[0].mxu0
        %951 = vdwg.mxu0
        %v952 = vpack.c.bf16 %v947, %v947
        %v953 = vld [vmem:[%s3] sm:$0xff]
        %v954 = vld [vmem:[%s3 + $0x8] sm:$0xff]
        %v955 = vld [vmem:[%s3 + $0x10] sm:$0xff]
        %v956 = vld [vmem:[%s3 + $0x18] sm:$0xff]
        %v957 = vld [vmem:[%s3 + $0x20] sm:$0xff]
        %v958 = vld [vmem:[%s3 + $0x28] sm:$0xff]
        %v959 = vld [vmem:[%s3 + $0x30] sm:$0xff]
        %v960 = vld [vmem:[%s3 + $0x38] sm:$0xff]
        %v961 = vld [vmem:[%s3 + $0x40] sm:$0xff]
        %v962 = vld [vmem:[%s3 + $0x48] sm:$0xff]
        %v963 = vld [vmem:[%s3 + $0x50] sm:$0xff]
        %v964 = vld [vmem:[%s3 + $0x58] sm:$0xff]
        %v965 = vld [vmem:[%s3 + $0x60] sm:$0xff]
        %v966 = vld [vmem:[%s3 + $0x68] sm:$0xff]
        %v967 = vld [vmem:[%s3 + $0x70] sm:$0xff]
        %v968 = vld [vmem:[%s3 + $0x78] sm:$0xff]
        %v969 = vmul.f32 %v791, %v836
        %970 = vrot.lane.b32.xlu0 %v791, 64
        %v971 = vpop.permute.xlu0 %970
        %v972 = vmul.f32 %v971, %v837
        %v973 = vadd.f32 %v969, %v972
        %v974 = vpack.c.bf16 %v973, %v973
        %975 = vmatprep.subr.bf16.mxu0 0
        %976 = vmatpush1.bf16.xpose.msra.mxu0 %v844
        %977 = vmatprep.subr.bf16.mxu0 0
        %978 = vmatpush1.bf16.xpose.msra.mxu0 0
        %979 = vmatprep.subr.bf16.mxu0 0
        %980 = vmatpush1.bf16.xpose.msra.mxu0 0
        %981 = vmatprep.subr.bf16.mxu0 0
        %982 = vmatpush1.bf16.xpose.msra.mxu0 0
        %983 = vmatprep.subr.bf16.mxu0 0
        %984 = vmatpush1.bf16.xpose.msra.mxu0 0
        %985 = vmatprep.subr.bf16.mxu0 0
        %986 = vmatpush1.bf16.xpose.msra.mxu0 0
        %987 = vmatprep.subr.bf16.mxu0 0
        %988 = vmatpush1.bf16.xpose.msra.mxu0 0
        %989 = vmatprep.subr.bf16.mxu0 0
        %990 = vmatpush1.bf16.xpose.msra.mxu0 0
        %991 = vmatprep.subr.bf16.mxu0 0
        %992 = vmatpush1.bf16.xpose.msra.mxu0 0
        %993 = vmatprep.subr.bf16.mxu0 0
        %994 = vmatpush1.bf16.xpose.msra.mxu0 0
        %995 = vmatprep.subr.bf16.mxu0 0
        %996 = vmatpush1.bf16.xpose.msra.mxu0 0
        %997 = vmatprep.subr.bf16.mxu0 0
        %998 = vmatpush1.bf16.xpose.msra.mxu0 0
        %999 = vmatprep.subr.bf16.mxu0 0
        %1000 = vmatpush1.bf16.xpose.msra.mxu0 0
        %1001 = vmatprep.subr.bf16.mxu0 0
        %1002 = vmatpush1.bf16.xpose.msra.mxu0 0
        %1003 = vmatprep.subr.bf16.mxu0 0
        %1004 = vmatpush1.bf16.xpose.msra.mxu0 0
        %1005 = vmatprep.subr.bf16.mxu0 0
        %1006 = vmatpush1.bf16.xpose.msra.mxu0 0
        %1007 = vmatprep.mubr.bf16.mxu0 0
        %1008 = vmatmul.mubr.bf16.gmra.mrb[0].mxu0 %v974
        %v1009 = vpop.f32.mrb[0].mxu0
        %v1010 = vadd.f32 %v838, %v1009
        %v1011 = vpop.f32.mrb[0].mxu0
        %v1012 = vpop.f32.mrb[0].mxu0
        %v1013 = vpop.f32.mrb[0].mxu0
        %1014 = vdwg.mxu0
        %v1015 = vsel %vm892, %v1010, -inf
        %1016 = vmax.xlane.f32.xlu0 %v1015
        %v1017 = vpop.xlane.xlu0 %1016
        %v1018 = vsub.f32 %v1010, %v1017
        %v1019 = vmul.f32 %v1018, 1.442695
        %v1020 = vpow.pop %v1019
        %v1021 = vsel %vm892, %v1020, 0.0
        %1022 = vadd.xlane.f32.xlu0 %v1021
        %v1023 = vpop.xlane.xlu0 %1022
        %v1024 = vrcp.pop %v1023
        %v1025 = vmul.f32 %v1020, %v1024
        %v1026 = vpack.c.bf16 %v1025, %v1025
        %v1028 = vsel %vm892, %v1026, 0
        %1030 = vmatprep.subr.bf16.mxu0 0
        %1031 = vmatpush1.bf16.msra.mxu0 %v910
        %1032 = vmatprep.subr.bf16.mxu0 0
        %1033 = vmatpush1.bf16.msra.mxu0 0
        %1034 = vmatprep.subr.bf16.mxu0 0
        %1035 = vmatpush1.bf16.msra.mxu0 0
        %1036 = vmatprep.subr.bf16.mxu0 0
        %1037 = vmatpush1.bf16.msra.mxu0 0
        %1038 = vmatprep.subr.bf16.mxu0 0
        %1039 = vmatpush1.bf16.msra.mxu0 0
        %1040 = vmatprep.subr.bf16.mxu0 0
        %1041 = vmatpush1.bf16.msra.mxu0 0
        %1042 = vmatprep.subr.bf16.mxu0 0
        %1043 = vmatpush1.bf16.msra.mxu0 0
        %1044 = vmatprep.subr.bf16.mxu0 0
        %1045 = vmatpush1.bf16.msra.mxu0 0
        %1046 = vmatprep.subr.bf16.mxu0 0
        %1047 = vmatpush1.bf16.msra.mxu0 0
        %1048 = vmatprep.subr.bf16.mxu0 0
        %1049 = vmatpush1.bf16.msra.mxu0 0
        %1050 = vmatprep.subr.bf16.mxu0 0
        %1051 = vmatpush1.bf16.msra.mxu0 0
        %1052 = vmatprep.subr.bf16.mxu0 0
        %1053 = vmatpush1.bf16.msra.mxu0 0
        %1054 = vmatprep.subr.bf16.mxu0 0
        %1055 = vmatpush1.bf16.msra.mxu0 0
        %1056 = vmatprep.subr.bf16.mxu0 0
        %1057 = vmatpush1.bf16.msra.mxu0 0
        %1058 = vmatprep.subr.bf16.mxu0 0
        %1059 = vmatpush1.bf16.msra.mxu0 0
        %1060 = vmatprep.subr.bf16.mxu0 0
        %1061 = vmatpush1.bf16.msra.mxu0 0
        %1062 = vmatprep.mubr.bf16.mxu0 0
        %1063 = vmatmul.mubr.bf16.gmra.mrb[0].mxu0 %v1028
        %v1064 = vpop.f32.mrb[0].mxu0
        %v1065 = vadd.f32 0.0, %v1064
        %v1066 = vpop.f32.mrb[0].mxu0
        %v1067 = vpop.f32.mrb[0].mxu0
        %v1068 = vpop.f32.mrb[0].mxu0
        %1069 = vdwg.mxu0
        %v1070 = vpack.c.bf16 %v1065, %v1065
        %v1071 = vld [vmem:[%s3 + $0x80] sm:$0xff]
        %v1072 = vld [vmem:[%s3 + $0x88] sm:$0xff]
        %v1073 = vld [vmem:[%s3 + $0x90] sm:$0xff]
        %v1074 = vld [vmem:[%s3 + $0x98] sm:$0xff]
        %v1075 = vld [vmem:[%s3 + $0xa0] sm:$0xff]
        %v1076 = vld [vmem:[%s3 + $0xa8] sm:$0xff]
        %v1077 = vld [vmem:[%s3 + $0xb0] sm:$0xff]
        %v1078 = vld [vmem:[%s3 + $0xb8] sm:$0xff]
        %v1079 = vld [vmem:[%s3 + $0xc0] sm:$0xff]
        %v1080 = vld [vmem:[%s3 + $0xc8] sm:$0xff]
        %v1081 = vld [vmem:[%s3 + $0xd0] sm:$0xff]
        %v1082 = vld [vmem:[%s3 + $0xd8] sm:$0xff]
        %v1083 = vld [vmem:[%s3 + $0xe0] sm:$0xff]
        %v1084 = vld [vmem:[%s3 + $0xe8] sm:$0xff]
        %v1085 = vld [vmem:[%s3 + $0xf0] sm:$0xff]
        %v1086 = vld [vmem:[%s3 + $0xf8] sm:$0xff]
        %v1103 = vunpack.c.l.b16 %v1071
        %v1104 = vunpack.c.h.b16 %v1071
        %v1105 = vunpack.c.l.b16 %v1072
        %v1106 = vunpack.c.h.b16 %v1072
        %v1107 = vunpack.c.l.b16 %v1073
        %v1108 = vunpack.c.h.b16 %v1073
        %v1109 = vunpack.c.l.b16 %v1074
        %v1110 = vunpack.c.h.b16 %v1074
        %v1111 = vunpack.c.l.b16 %v1075
        %v1112 = vunpack.c.h.b16 %v1075
        %v1113 = vunpack.c.l.b16 %v1076
        %v1114 = vunpack.c.h.b16 %v1076
        %v1115 = vunpack.c.l.b16 %v1077
        %v1116 = vunpack.c.h.b16 %v1077
        %v1117 = vunpack.c.l.b16 %v1078
        %v1118 = vunpack.c.h.b16 %v1078
        %v1119 = vunpack.c.l.b16 %v1079
        %v1120 = vunpack.c.h.b16 %v1079
        %v1121 = vunpack.c.l.b16 %v1080
        %v1122 = vunpack.c.h.b16 %v1080
        %v1123 = vunpack.c.l.b16 %v1081
        %v1124 = vunpack.c.h.b16 %v1081
        %v1125 = vunpack.c.l.b16 %v1082
        %v1126 = vunpack.c.h.b16 %v1082
        %v1127 = vunpack.c.l.b16 %v1083
        %v1128 = vunpack.c.h.b16 %v1083
        %v1129 = vunpack.c.l.b16 %v1084
        %v1130 = vunpack.c.h.b16 %v1084
        %v1131 = vunpack.c.l.b16 %v1085
        %v1132 = vunpack.c.h.b16 %v1085
        %v1133 = vunpack.c.l.b16 %v1086
        %v1134 = vunpack.c.h.b16 %v1086
        %v1135 = vpack.c.b16 %v1105, %v1103
        %v1136 = vpack.c.b16 %v1106, %v1104
        %v1137 = vpack.c.b16 %v1109, %v1107
        %v1138 = vpack.c.b16 %v1110, %v1108
        %v1139 = vpack.c.b16 %v1113, %v1111
        %v1140 = vpack.c.b16 %v1114, %v1112
        %v1141 = vpack.c.b16 %v1117, %v1115
        %v1142 = vpack.c.b16 %v1118, %v1116
        %v1143 = vpack.c.b16 %v1121, %v1119
        %v1144 = vpack.c.b16 %v1122, %v1120
        %v1145 = vpack.c.b16 %v1125, %v1123
        %v1146 = vpack.c.b16 %v1126, %v1124
        %v1147 = vpack.c.b16 %v1129, %v1127
        %v1148 = vpack.c.b16 %v1130, %v1128
        %v1149 = vpack.c.b16 %v1133, %v1131
        %v1150 = vpack.c.b16 %v1134, %v1132
        %1167 = vmatprep.subr.bf16.mxu0 %v1136
        %1168 = vmatpush1.bf16.msra.mxu0 %v1135
        %1169 = vmatprep.subr.bf16.mxu0 %v1138
        %1170 = vmatpush1.bf16.msra.mxu0 %v1137
        %1171 = vmatprep.subr.bf16.mxu0 %v1140
        %1172 = vmatpush1.bf16.msra.mxu0 %v1139
        %1173 = vmatprep.subr.bf16.mxu0 %v1142
        %1174 = vmatpush1.bf16.msra.mxu0 %v1141
        %1175 = vmatprep.subr.bf16.mxu0 %v1144
        %1176 = vmatpush1.bf16.msra.mxu0 %v1143
        %1177 = vmatprep.subr.bf16.mxu0 %v1146
        %1178 = vmatpush1.bf16.msra.mxu0 %v1145
        %1179 = vmatprep.subr.bf16.mxu0 %v1148
        %1180 = vmatpush1.bf16.msra.mxu0 %v1147
        %1181 = vmatprep.subr.bf16.mxu0 %v1150
        %1182 = vmatpush1.bf16.msra.mxu0 %v1149
        %1183 = vmatprep.subr.bf16.mxu0 0
        %1184 = vmatpush1.bf16.msra.mxu0 0
        %1185 = vmatprep.subr.bf16.mxu0 0
        %1186 = vmatpush1.bf16.msra.mxu0 0
        %1187 = vmatprep.subr.bf16.mxu0 0
        %1188 = vmatpush1.bf16.msra.mxu0 0
        %1189 = vmatprep.subr.bf16.mxu0 0
        %1190 = vmatpush1.bf16.msra.mxu0 0
        %1191 = vmatprep.subr.bf16.mxu0 0
        %1192 = vmatpush1.bf16.msra.mxu0 0
        %1193 = vmatprep.subr.bf16.mxu0 0
        %1194 = vmatpush1.bf16.msra.mxu0 0
        %1195 = vmatprep.subr.bf16.mxu0 0
        %1196 = vmatpush1.bf16.msra.mxu0 0
        %1197 = vmatprep.subr.bf16.mxu0 0
        %1198 = vmatpush1.bf16.msra.mxu0 0
        %1199 = vmatprep.mubr.bf16.mxu0 0
        %1200 = vmatmul.mubr.bf16.gmra.mrb[0].mxu0 %v1070
        %v1201 = vpop.f32.mrb[0].mxu0
        %v1202 = vadd.f32 0.0, %v1201
        %v1203 = vpop.f32.mrb[0].mxu0
        %v1204 = vadd.f32 0.0, %v1203
        %v1205 = vpop.f32.mrb[0].mxu0
        %v1206 = vpop.f32.mrb[0].mxu0
        %1207 = vdwg.mxu0
        %v1224 = vunpack.c.l.b16 %v953
        %v1225 = vunpack.c.h.b16 %v953
        %v1226 = vunpack.c.l.b16 %v954
        %v1227 = vunpack.c.h.b16 %v954
        %v1228 = vunpack.c.l.b16 %v955
        %v1229 = vunpack.c.h.b16 %v955
        %v1230 = vunpack.c.l.b16 %v956
        %v1231 = vunpack.c.h.b16 %v956
        %v1232 = vunpack.c.l.b16 %v957
        %v1233 = vunpack.c.h.b16 %v957
        %v1234 = vunpack.c.l.b16 %v958
        %v1235 = vunpack.c.h.b16 %v958
        %v1236 = vunpack.c.l.b16 %v959
        %v1237 = vunpack.c.h.b16 %v959
        %v1238 = vunpack.c.l.b16 %v960
        %v1239 = vunpack.c.h.b16 %v960
        %v1240 = vunpack.c.l.b16 %v961
        %v1241 = vunpack.c.h.b16 %v961
        %v1242 = vunpack.c.l.b16 %v962
        %v1243 = vunpack.c.h.b16 %v962
        %v1244 = vunpack.c.l.b16 %v963
        %v1245 = vunpack.c.h.b16 %v963
        %v1246 = vunpack.c.l.b16 %v964
        %v1247 = vunpack.c.h.b16 %v964
        %v1248 = vunpack.c.l.b16 %v965
        %v1249 = vunpack.c.h.b16 %v965
        %v1250 = vunpack.c.l.b16 %v966
        %v1251 = vunpack.c.h.b16 %v966
        %v1252 = vunpack.c.l.b16 %v967
        %v1253 = vunpack.c.h.b16 %v967
        %v1254 = vunpack.c.l.b16 %v968
        %v1255 = vunpack.c.h.b16 %v968
        %v1256 = vpack.c.b16 %v1226, %v1224
        %v1257 = vpack.c.b16 %v1227, %v1225
        %v1258 = vpack.c.b16 %v1230, %v1228
        %v1259 = vpack.c.b16 %v1231, %v1229
        %v1260 = vpack.c.b16 %v1234, %v1232
        %v1261 = vpack.c.b16 %v1235, %v1233
        %v1262 = vpack.c.b16 %v1238, %v1236
        %v1263 = vpack.c.b16 %v1239, %v1237
        %v1264 = vpack.c.b16 %v1242, %v1240
        %v1265 = vpack.c.b16 %v1243, %v1241
        %v1266 = vpack.c.b16 %v1246, %v1244
        %v1267 = vpack.c.b16 %v1247, %v1245
        %v1268 = vpack.c.b16 %v1250, %v1248
        %v1269 = vpack.c.b16 %v1251, %v1249
        %v1270 = vpack.c.b16 %v1254, %v1252
        %v1271 = vpack.c.b16 %v1255, %v1253
        %1288 = vmatprep.subr.bf16.mxu0 %v1257
        %1289 = vmatpush1.bf16.msra.mxu0 %v1256
        %1290 = vmatprep.subr.bf16.mxu0 %v1259
        %1291 = vmatpush1.bf16.msra.mxu0 %v1258
        %1292 = vmatprep.subr.bf16.mxu0 %v1261
        %1293 = vmatpush1.bf16.msra.mxu0 %v1260
        %1294 = vmatprep.subr.bf16.mxu0 %v1263
        %1295 = vmatpush1.bf16.msra.mxu0 %v1262
        %1296 = vmatprep.subr.bf16.mxu0 %v1265
        %1297 = vmatpush1.bf16.msra.mxu0 %v1264
        %1298 = vmatprep.subr.bf16.mxu0 %v1267
        %1299 = vmatpush1.bf16.msra.mxu0 %v1266
        %1300 = vmatprep.subr.bf16.mxu0 %v1269
        %1301 = vmatpush1.bf16.msra.mxu0 %v1268
        %1302 = vmatprep.subr.bf16.mxu0 %v1271
        %1303 = vmatpush1.bf16.msra.mxu0 %v1270
        %1304 = vmatprep.subr.bf16.mxu0 0
        %1305 = vmatpush1.bf16.msra.mxu0 0
        %1306 = vmatprep.subr.bf16.mxu0 0
        %1307 = vmatpush1.bf16.msra.mxu0 0
        %1308 = vmatprep.subr.bf16.mxu0 0
        %1309 = vmatpush1.bf16.msra.mxu0 0
        %1310 = vmatprep.subr.bf16.mxu0 0
        %1311 = vmatpush1.bf16.msra.mxu0 0
        %1312 = vmatprep.subr.bf16.mxu0 0
        %1313 = vmatpush1.bf16.msra.mxu0 0
        %1314 = vmatprep.subr.bf16.mxu0 0
        %1315 = vmatpush1.bf16.msra.mxu0 0
        %1316 = vmatprep.subr.bf16.mxu0 0
        %1317 = vmatpush1.bf16.msra.mxu0 0
        %1318 = vmatprep.subr.bf16.mxu0 0
        %1319 = vmatpush1.bf16.msra.mxu0 0
        %1320 = vmatprep.mubr.bf16.mxu0 0
        %1321 = vmatmul.mubr.bf16.gmra.mrb[0].mxu0 %v952
        %v1322 = vpop.f32.mrb[0].mxu0
        %v1323 = vadd.f32 %v1202, %v1322
        %v1324 = vpop.f32.mrb[0].mxu0
        %v1325 = vadd.f32 %v1204, %v1324
        %v1326 = vpop.f32.mrb[0].mxu0
        %v1327 = vpop.f32.mrb[0].mxu0
        %1328 = vdwg.mxu0
        %1329 = vst [vmem:[%s325] sm:$0xff] %v1323
        %1330 = vst [vmem:[%s325 + $0x8] sm:$0xff] %v1325
        %s1331 = sand.u32 %s197, 1
        %s1332 = scalar_lea.sflag [#allocation4], %s1331
        %s1333 = sand.u32 %s197, 1
        %s1334 = smul.addr %s1333, 16
        %s1335 = scalar_lea.vmem [#allocation5], %s1334
        // Predicated region
        $region53: #{buding_attention_forward.1} parent=47 // pred_check
          %p1336 = pneg %p207
        $region54: #{buding_attention_forward.1} parent=47 // pred_check_branch
          %1338 = sbr.rel (%p1336) target = $region56
        $region55: #{buding_attention_forward.1} parent=47 // pred_region
          %s1340 = ssub.s32 256, 256
          %1341 = vsyncadd %s1332, %s1340
          %s1342 = smul.addr %s22, 2
          %s1343 = smul.addr %s1342, 128
          %s1344 = scalar_lea.hbm %s7, %s1343
          %s1346 = sshll.u32 %s1335, 4
          %s1347 = int_to_ptr.vmem [resolvable:$true] %s1346
          %1349 = dma.vmem_to_hbm [thread:$0]  %s1347, 256, %s1344, %s1332
        $region56: #{buding_attention_forward.1} parent=47 // pred_fallthru
          _
      $region48: #{buding_attention_forward.1} parent=5 // pred_fallthru
        _
      %p1350 = scmp.le.s32.totalorder 2, %s17
      // Predicated region
      $region57: #{buding_attention_forward.1} parent=5 // pred_check
        %p1351 = pneg %p1350
      $region58: #{buding_attention_forward.1} parent=5 // pred_check_branch
        %1353 = sbr.rel (%p1351) target = $region60
      $region59: #{buding_attention_forward.1} parent=5 // pred_region
        %s1354 = ssub.s32 %s17, 2
        // Predicated region
        $region61: #{buding_attention_forward.1} parent=59 // pred_check
          %p1355 = pneg %p213
        $region62: #{buding_attention_forward.1} parent=59 // pred_check_branch
          %1357 = sbr.rel (%p1355) target = $region64
        $region63: #{buding_attention_forward.1} parent=59 // pred_region
          %s1358 = sand.u32 %s198, 1
          %s1359 = scalar_lea.sflag [#allocation4], %s1358
          %s1360 = sand.u32 %s198, 1
          %s1361 = smul.addr %s1360, 16
          %s1362 = scalar_lea.vmem [#allocation5], %s1361
          %1363 = dma.done %s1359, 256
        $region64: #{buding_attention_forward.1} parent=59 // pred_fallthru
          _
      $region60: #{buding_attention_forward.1} parent=5 // pred_fallthru
        _
    $region6: #{buding_attention_forward.1} parent=1 // loop_footer
      %s21 = sadd.s32 1, %s17
    $region7: #{buding_attention_forward.1} parent=1 // loop_footer_branch
      %16 = sbr.rel target = $region3
    $region8: #{buding_attention_forward.1} parent=1 // loop_exit
      _
    %1364 = vsyncpa [#allocation3], 1
    %s1365 = scalar_lea.sflag [#allocation3], 1
    %1366 = vsyncpa %s1365, 1
    %1367 = vsyncpa [#allocation4], 1
    %s1368 = scalar_lea.sflag [#allocation4], 1
    %1369 = vsyncpa %s1368, 1

</llo_original>
